<compile_context>
chip_gen: v7x
topology: tpu7x:2x2x1
jax: 0.10.0
libtpu: 0.0.40
codegen_flags: <defaults>
</compile_context>

<pallas_src>
import functools

import jax
import jax.numpy as jnp
import numpy as np
from jax.experimental import pallas as pl
from jax.experimental.pallas import tpu as pltpu

LANES = 128
BN_EPS = 1e-5
LRELU_SLOPE = 0.1


def _round_up(x, m):
    return (x + m - 1) // m * m


def _cdiv(a, b):
    return (a + b - 1) // b


# ----------------------------- Pallas kernels -------------------------------

def _convt_mask_kernel(p_ref, w_ref, o_ref):
    """Complex transposed-conv tile (one MXU matmul) + fused last=True mask."""
    acc = jnp.dot(p_ref[...], w_ref[...], preferred_element_type=jnp.float32)
    a = jnp.abs(acc)
    # reciprocal + tanh both ride the EUP slot -> epilogue stays off the VALU.
    o_ref[...] = acc * pl.reciprocal(a + 1e-8, approx=True) * jnp.tanh(a)


def _convt_stats_kernel(p_ref, w_ref, o_ref, st_ref):
    """Complex transposed-conv tile + merged per-block BN partial sums.

    o_ref  : bf16 intermediate (halves the BN-path HBM round trip).
    st_ref : (8, cw) block; row 0 = column sums, row 1 = column sum-of-squares,
             computed from the f32 accumulator *before* the bf16 cast.
    """
    acc = jnp.dot(p_ref[...], w_ref[...], preferred_element_type=jnp.float32)
    o_ref[...] = acc.astype(o_ref.dtype)
    s = jnp.sum(acc, axis=0, keepdims=True)
    q = jnp.sum(acc * acc, axis=0, keepdims=True)
    rows = jax.lax.broadcasted_iota(jnp.int32, st_ref.shape, 0)
    st_ref[...] = jnp.where(
        rows == 0, jnp.broadcast_to(s, st_ref.shape),
        jnp.where(rows == 1, jnp.broadcast_to(q, st_ref.shape), 0.0))


def _bn_lrelu_kernel(x_ref, scale_ref, shift_ref, o_ref):
    """Pass 2: y = x*scale + shift (folded BN), then LeakyReLU(0.1)."""
    y = x_ref[...].astype(jnp.float32) * scale_ref[...] + shift_ref[...]
    o_ref[...] = jnp.where(y >= 0, y, LRELU_SLOPE * y)


# ------------------------------ JAX glue -------------------------------------

def _phase_geometry(k, s, p):
    """Phase decomposition metadata: output index o = s*t + r uses input index
    t + e_r - m and kernel tap a_r + s*m for m in [0, M_r)."""
    a = [(r + p) % s for r in range(s)]
    e = [(r + p) // s for r in range(s)]
    M = [max(0, _cdiv(k - a[r], s)) for r in range(s)]
    live = [r for r in range(s) if M[r] > 0]
    d_min = min(e[r] - (M[r] - 1) for r in live)
    win = max(e[r] for r in live) - d_min + 1
    tap = np.full((s, win), -1, dtype=np.int64)
    for r in range(s):
        for u in range(win):
            m = e[r] - d_min - u
            ki = a[r] + s * m
            if 0 <= m < M[r] and 0 <= ki < k:
                tap[r, u] = ki
    return d_min, win, tap


def _phase_patches(x_pad, win_h, win_w, off_h, off_w, T_h, T_w):
    """x_pad: (N, C, Hp, Wp) -> patches (N*T_h*T_w, C*win_h*win_w)."""
    N, C = x_pad.shape[0], x_pad.shape[1]
    taps = []
    for u in range(win_h):
        for v in range(win_w):
            taps.append(x_pad[:, :, off_h + u: off_h + u + T_h,
                              off_w + v: off_w + v + T_w])
    p = jnp.stack(taps, axis=0).reshape(win_h, win_w, N, C, T_h, T_w)
    p = p.transpose(2, 4, 5, 3, 0, 1)          # (N, T_h, T_w, C, u, v)
    return p.reshape(N * T_h * T_w, C * win_h * win_w)


def _phase_weight(Wbig, tap_h, tap_w, sh, sw):
    """Wbig: (C2in, C2out, kh, kw) -> (C2in*win_h*win_w, sh*sw*C2out);
    row order (ci, u, v), column order (r, r', co)."""
    C2in, C2out = Wbig.shape[0], Wbig.shape[1]
    win_h, win_w = tap_h.shape[1], tap_w.shape[1]
    Wm = jnp.zeros((C2in, win_h, win_w, sh, sw, C2out), Wbig.dtype)
    for r in range(sh):
        for u in range(win_h):
            ki = int(tap_h[r, u])
            if ki < 0:
                continue
            for rp in range(sw):
                for v in range(win_w):
                    kj = int(tap_w[rp, v])
                    if kj < 0:
                        continue
                    Wm = Wm.at[:, u, v, r, rp, :].set(Wbig[:, :, ki, kj])
    return Wm.reshape(C2in * win_h * win_w, sh * sw * C2out)


def _choose_tm(mpk, kp, cw, n_chunks, vmem_phys):
    """M-tile: as big as the VMEM budget allows, >=2 grid steps when possible
    (megacore), bounded row-padding waste."""
    budget = max(8 << 20, int(vmem_phys * 0.4))
    per_row = 2 * kp * 2 + 2 * cw * 4 + 2 * cw * 2   # dbl-buffered patch/out/interm
    tm = budget // max(per_row, 1)
    tm = max(16, min(1024, tm))
    tm -= tm % 16
    tm = min(tm, _round_up(mpk, 8))
    if mpk >= 16 and _cdiv(mpk, tm) * n_chunks < 2:
        tm = _round_up(_cdiv(mpk, 2), 8)
    while tm > 16 and (_round_up(mpk, tm) - mpk) * 8 > mpk:
        tm = max(16, _round_up(tm // 2, 8))
    return max(8, tm)


def decoder_block_forward(x, params, *, stride, padding, output_padding,
                          last=False):
    """x: (N, Cin, H, W, 2) float32 -> (N, Cout, Hout, Wout, 2) float32."""
    Wr, Wi = params["Wr"], params["Wi"]                    # (Cin, Cout, kh, kw)
    N, Cin, H, W, _ = x.shape
    Cout = Wr.shape[1]
    kh, kw = Wr.shape[2], Wr.shape[3]
    sh, sw = stride
    ph, pw = padding
    oph, opw = output_padding

    Hout = (H - 1) * sh - 2 * ph + kh + oph
    Wout = (W - 1) * sw - 2 * pw + kw + opw
    C2 = 2 * Cout
    C2s = C2 * sh * sw                     # output columns per group position

    # ---- phase (sub-pixel) decomposition geometry --------------------------
    d_min_h, win_h, tap_h = _phase_geometry(kh, sh, ph)
    d_min_w, win_w, tap_w = _phase_geometry(kw, sw, pw)
    T_h, T_w = _cdiv(Hout, sh), _cdiv(Wout, sw)

    off_h, pad_top = max(d_min_h, 0), max(-d_min_h, 0)
    off_w, pad_lft = max(d_min_w, 0), max(-d_min_w, 0)
    pad_bot = max(0, off_h + T_h + win_h - 1 - (H + pad_top))
    pad_rgt = max(0, off_w + T_w + win_w - 1 - (W + pad_lft))

    # channel-stacked [real | imag] input, cast to bf16 BEFORE the gather so
    # the (small, undilated) patch slab is half-width in HBM.
    x_cat = jnp.concatenate([x[..., 0], x[..., 1]], axis=1).astype(jnp.bfloat16)
    x_pad = jnp.pad(x_cat, ((0, 0), (0, 0),
                            (pad_top, pad_bot), (pad_lft, pad_rgt)))
    patches = _phase_patches(x_pad, win_h, win_w, off_h, off_w, T_h, T_w)
    Mg, K2w = patches.shape                # Mg = N*T_h*T_w, K2w = 2Cin*wh*ww

    # ---- complex-block weight in phase form ---------------------------------
    Wbig = jnp.concatenate([
        jnp.concatenate([Wr, Wi], axis=1),
        jnp.concatenate([-Wi, Wr], axis=1)], axis=0)       # (2Cin, 2Cout, kh, kw)
    w_phase = _phase_weight(Wbig, tap_h, tap_w, sh, sw)    # (K2w, C2s)

    # ---- lane packing / output-channel chunking -----------------------------
    if C2s >= LANES:
        pack = 1
        n_chunks = _cdiv(C2s, LANES)
        nl_tot = n_chunks * LANES
        chunk_w = LANES
        w_mat = jnp.pad(w_phase, ((0, 0), (0, nl_tot - C2s)))
        Kp = K2w
    else:
        pack = LANES // C2s
        n_chunks = 1
        nl_tot = pack * C2s
        chunk_w = nl_tot
        # Block-diagonal weight packs `pack` consecutive group rows into one
        # lane-dense output row (no in-kernel relayout; MXU slack absorbs the
        # extra structured-zero flops on these DMA-bound shapes).
        w_mat = jnp.kron(jnp.eye(pack, dtype=w_phase.dtype), w_phase)
        Kp = pack * K2w

    Mg_pk = _round_up(Mg, pack)
    patches = jnp.pad(patches, ((0, Mg_pk - Mg), (0, 0)))
    Mpk = Mg_pk // pack
    patches = patches.reshape(Mpk, Kp)

    # ---- adaptive tiling & VMEM budget --------------------------------------
    try:
        vmem_phys = int(pltpu.get_tpu_info().vmem_capacity_bytes)
    except Exception:
        vmem_phys = 64 * 1024 * 1024
    TM = _choose_tm(Mpk, Kp, chunk_w, n_chunks, vmem_phys)
    Mp = _round_up(Mpk, TM)
    GM = Mp // TM
    patches = jnp.pad(patches, ((0, Mp - Mpk), (0, 0)))
    w_bf = w_mat.astype(jnp.bfloat16)

    vmem_need = (2 * TM * Kp * 2 + 2 * Kp * chunk_w * 2 + 2 * TM * chunk_w * 4
                 + 2 * TM * chunk_w * 2 + 2 * 8 * chunk_w * 4 + (2 << 20))
    vmem_limit = int(min(max(2 * vmem_need, 32 << 20), int(vmem_phys * 0.9)))
    cparams = pltpu.CompilerParams(
        dimension_semantics=("parallel", "parallel"),
        vmem_limit_bytes=vmem_limit)

    p_spec = pl.BlockSpec((TM, Kp), lambda m, j: (m, 0))
    w_spec = pl.BlockSpec((Kp, chunk_w), lambda m, j: (0, j))
    o_spec = pl.BlockSpec((TM, chunk_w), lambda m, j: (m, j))

    useful_flops = 2 * Mg * K2w * C2s

    if last:
        cost = pl.CostEstimate(
            flops=useful_flops,
            transcendentals=2 * Mg * C2s,
            bytes_accessed=Mp * Kp * 2 + Kp * nl_tot * 2 + Mp * nl_tot * 4)
        slab = pl.pallas_call(
            _convt_mask_kernel,
            out_shape=jax.ShapeDtypeStruct((Mp, nl_tot), jnp.float32),
            grid=(GM, n_chunks),
            in_specs=[p_spec, w_spec],
            out_specs=o_spec,
            compiler_params=cparams,
            cost_estimate=cost,
        )(patches, w_bf)
    else:
        cost1 = pl.CostEstimate(
            flops=useful_flops,
            transcendentals=0,
            bytes_accessed=(Mp * Kp * 2 + Kp * nl_tot * 2 + Mp * nl_tot * 2
                            + GM * 8 * nl_tot * 4))
        interm, stats = pl.pallas_call(
            _convt_stats_kernel,
            out_shape=(jax.ShapeDtypeStruct((Mp, nl_tot), jnp.bfloat16),
                       jax.ShapeDtypeStruct((GM * 8, nl_tot), jnp.float32)),
            grid=(GM, n_chunks),
            in_specs=[p_spec, w_spec],
            out_specs=(o_spec,
                       pl.BlockSpec((8, chunk_w), lambda m, j: (m, j))),
            compiler_params=cparams,
            cost_estimate=cost1,
        )(patches, w_bf)

        if Hout % sh == 0 and Wout % sw == 0:
            # Padded rows/groups are exactly zero -> they contribute nothing to
            # the sums; divide by the true pixel count.
            st = stats.reshape(GM, 8, nl_tot)
            col_sum = st[:, 0, :].sum(axis=0)
            col_sq = st[:, 1, :].sum(axis=0)
            chan_sum = col_sum[:pack * C2s].reshape(pack * sh * sw, C2).sum(0)
            chan_sq = col_sq[:pack * C2s].reshape(pack * sh * sw, C2).sum(0)
            cnt = float(N * Hout * Wout)
            mean = chan_sum / cnt
            var = chan_sq / cnt - mean * mean
        else:
            # TODO(synk): fold this boundary-phase masking into the stats
            # kernel so this (rare) path also avoids re-reading the slab.
            rows = _cdiv(Mg, pack)
            dec = interm[:rows, :pack * C2s].astype(jnp.float32)
            dec = dec.reshape(rows * pack, C2s)[:Mg]
            dec = dec.reshape(N, T_h, T_w, sh, sw, C2)
            ho = jnp.arange(T_h)[:, None] * sh + jnp.arange(sh)[None, :]
            wo = jnp.arange(T_w)[:, None] * sw + jnp.arange(sw)[None, :]
            mask = ((ho < Hout)[None, :, None, :, None, None]
                    & (wo < Wout)[None, None, :, None, :, None])
            cnt = float(N * Hout * Wout)
            mean = jnp.sum(jnp.where(mask, dec, 0.0), axis=(0, 1, 2, 3, 4)) / cnt
            var = (jnp.sum(jnp.where(mask, dec * dec, 0.0),
                           axis=(0, 1, 2, 3, 4)) / cnt - mean * mean)

        inv = jax.lax.rsqrt(var + BN_EPS)
        gamma = jnp.concatenate([params["gamma_r"], params["gamma_i"]])
        beta = jnp.concatenate([params["beta_r"], params["beta_i"]])
        scale_c = gamma * inv
        shift_c = beta - mean * scale_c
        scale_cols = jnp.tile(scale_c, pack * sh * sw)
        shift_cols = jnp.tile(shift_c, pack * sh * sw)
        scale_cols = jnp.pad(scale_cols, (0, nl_tot - scale_cols.shape[0]))
        shift_cols = jnp.pad(shift_cols, (0, nl_tot - shift_cols.shape[0]))
        scale_cols = scale_cols.reshape(1, nl_tot).astype(jnp.float32)
        shift_cols = shift_cols.reshape(1, nl_tot).astype(jnp.float32)

        cost2 = pl.CostEstimate(
            flops=2 * Mp * nl_tot, transcendentals=0,
            bytes_accessed=Mp * nl_tot * 2 + Mp * nl_tot * 4 + 2 * nl_tot * 4)
        slab = pl.pallas_call(
            _bn_lrelu_kernel,
            out_shape=jax.ShapeDtypeStruct((Mp, nl_tot), jnp.float32),
            grid=(GM, n_chunks),
            in_specs=[o_spec,
                      pl.BlockSpec((1, chunk_w), lambda m, j: (0, j)),
                      pl.BlockSpec((1, chunk_w), lambda m, j: (0, j))],
            out_specs=pl.BlockSpec((TM, chunk_w), lambda m, j: (m, j)),
            compiler_params=cparams,
            cost_estimate=cost2,
        )(interm, scale_cols, shift_cols)

    # ---- unpack: lane-packed phase slab -> (N, Cout, Hout, Wout, 2) ---------
    rows = _cdiv(Mg, pack)
    out = slab[:rows, :pack * C2s].reshape(rows * pack, C2s)[:Mg]
    out = out.reshape(N, T_h, T_w, sh, sw, C2)
    out = out.transpose(0, 5, 1, 3, 2, 4).reshape(N, C2, T_h * sh, T_w * sw)
    out = out[:, :, :Hout, :Wout]
    return jnp.stack([out[:, :Cout], out[:, Cout:]], axis=-1)


# --------------------------- pure-JAX reference ------------------------------

def _ref_conv_transpose(x, Wc, stride, padding, output_padding):
    kh, kw = Wc.shape[2], Wc.shape[3]
    Wt = jnp.flip(Wc, axis=(2, 3)).transpose(1, 0, 2, 3)   # (Cout, Cin, kh, kw)
    return jax.lax.conv_general_dilated(
        x, Wt, window_strides=(1, 1),
        padding=[(kh - 1 - padding[0], kh - 1 - padding[0] + output_padding[0]),
                 (kw - 1 - padding[1], kw - 1 - padding[1] + output_padding[1])],
        lhs_dilation=stride, rhs_dilation=(1, 1),
        dimension_numbers=('NCHW', 'OIHW', 'NCHW'))


def _ref_decoder_block(x, params, *, stride, padding, output_padding, last):
    Wr, Wi = params["Wr"], params["Wi"]
    xr, xi = x[..., 0], x[..., 1]
    cr = (_ref_conv_transpose(xr, Wr, stride, padding, output_padding)
          - _ref_conv_transpose(xi, Wi, stride, padding, output_padding))
    ci = (_ref_conv_transpose(xi, Wr, stride, padding, output_padding)
          + _ref_conv_transpose(xr, Wi, stride, padding, output_padding))
    if last:
        def f(z):
            a = jnp.abs(z)
            return (z / (a + 1e-8)) * jnp.tanh(a)
        return jnp.stack([f(cr), f(ci)], axis=-1)

    def bn(z, g, b):
        m = z.mean(axis=(0, 2, 3), keepdims=True)
        v = ((z - m) ** 2).mean(axis=(0, 2, 3), keepdims=True)
        return (z - m) / jnp.sqrt(v + BN_EPS) * g.reshape(1, -1, 1, 1) \
               + b.reshape(1, -1, 1, 1)

    def lr(z):
        return jnp.where(z >= 0, z, LRELU_SLOPE * z)

    return jnp.stack([lr(bn(cr, params["gamma_r"], params["beta_r"])),
                      lr(bn(ci, params["gamma_i"], params["beta_i"]))], axis=-1)


# --------------------------------- main ---------------------------------------

def _make_params(key, Cin, Cout, ksize):
    kwr, kwi, kg1, kb1, kg2, kb2 = jax.random.split(key, 6)
    return {
        "Wr": 0.1 * jax.random.normal(kwr, (Cin, Cout) + ksize, jnp.float32),
        "Wi": 0.1 * jax.random.normal(kwi, (Cin, Cout) + ksize, jnp.float32),
        "gamma_r": 1.0 + 0.1 * jax.random.normal(kg1, (Cout,), jnp.float32),
        "beta_r": 0.1 * jax.random.normal(kb1, (Cout,), jnp.float32),
        "gamma_i": 1.0 + 0.1 * jax.random.normal(kg2, (Cout,), jnp.float32),
        "beta_i": 0.1 * jax.random.normal(kb2, (Cout,), jnp.float32),
    }


if __name__ == "__main__":
    key = jax.random.PRNGKey(0)
    kx1, kp1, kx2, kp2 = jax.random.split(key, 4)

    configs = [
        # (N, Cin, Cout, H, W, ksize, stride, padding, output_padding)
        (2, 8, 4, 8, 8, (3, 3), (2, 2), (1, 1), (1, 1)),   # even phases
        (1, 4, 3, 5, 6, (3, 3), (2, 2), (0, 0), (0, 0)),   # odd Hout/Wout
    ]
    xs = [jax.random.normal(kx1, (2, 8, 8, 8, 2), jnp.float32),
          jax.random.normal(kx2, (1, 4, 5, 6, 2), jnp.float32)]
    ps = [_make_params(kp1, 8, 4, (3, 3)), _make_params(kp2, 4, 3, (3, 3))]

    for (cfg, x, params) in zip(configs, xs, ps):
        N, Cin, Cout, H, W, ksize, stride, padding, opad = cfg
        Hout = (H - 1) * stride[0] - 2 * padding[0] + ksize[0] + opad[0]
        Wout = (W - 1) * stride[1] - 2 * padding[1] + ksize[1] + opad[1]
        for last in (False, True):
            fwd = jax.jit(functools.partial(
                decoder_block_forward, stride=stride, padding=padding,
                output_padding=opad, last=last))
            out = jax.block_until_ready(fwd(x, params))
            ref = _ref_decoder_block(x, params, stride=stride, padding=padding,
                                     output_padding=opad, last=last)
            # bf16 MXU inputs (f32 accumulate) -> slightly loosened tolerance.
            np.testing.assert_allclose(np.asarray(out), np.asarray(ref),
                                       rtol=2e-2, atol=2e-2)
            assert out.shape == (N, Cout, Hout, Wout, 2)

    print("KERNEL_OK")
</pallas_src>

<mosaic_0001>
module attributes {stable_mosaic.version = 11 : i64} {
  func.func @_convt_stats_kernel(%arg0: i32, %arg1: i32, %arg2: memref<16x256xbf16, #tpu.memory_space<vmem>>, %arg3: memref<256x128xbf16, #tpu.memory_space<vmem>>, %arg4: memref<16x128xbf16, #tpu.memory_space<vmem>>, %arg5: memref<8x128xf32, #tpu.memory_space<vmem>>) attributes {dimension_semantics = [#tpu.dimension_semantics<parallel>, #tpu.dimension_semantics<parallel>], iteration_bounds = array<i64: 2, 1>, scalar_prefetch = 0 : i64, scratch_operands = 0 : i64, tpu.core_type = #tpu.core_type<tc>, window_params = [{transform_indices = @transform_0, window_bounds = array<i64: 16, 256>}, {transform_indices = @transform_1, window_bounds = array<i64: 256, 128>}, {transform_indices = @transform_2, window_bounds = array<i64: 16, 128>}, {transform_indices = @transform_3, window_bounds = array<i64: 8, 128>}]} {
    %c0 = arith.constant 0 : index
    %c0_0 = arith.constant 0 : index
    %0 = vector.load %arg2[%c0, %c0_0] : memref<16x256xbf16, #tpu.memory_space<vmem>>, vector<16x256xbf16>
    %c0_1 = arith.constant 0 : index
    %c0_2 = arith.constant 0 : index
    %1 = vector.load %arg3[%c0_1, %c0_2] : memref<256x128xbf16, #tpu.memory_space<vmem>>, vector<256x128xbf16>
    %cst = arith.constant dense<0.000000e+00> : vector<16x128xf32>
    %2 = tpu.matmul %0, %1, %cst {dimension_numbers = #tpu.dot_dimension_numbers<[1], [0], [0], [1], [0, 0, 1, 1], [], []>} : vector<16x256xbf16>, vector<256x128xbf16>, vector<16x128xf32> -> vector<16x128xf32>
    %3 = arith.truncf %2 : vector<16x128xf32> to vector<16x128xbf16>
    %c0_3 = arith.constant 0 : index
    %c0_4 = arith.constant 0 : index
    %4 = vector.load %arg4[%c0_3, %c0_4] : memref<16x128xbf16, #tpu.memory_space<vmem>>, vector<16x128xbf16>
    tpu.vector_store %arg4[%c0_3, %c0_4], %3 {strides = array<i32>} : memref<16x128xbf16, #tpu.memory_space<vmem>>, vector<16x128xbf16>,
    %cst_5 = arith.constant dense<0.000000e+00> : vector<128xf32>
    %5 = vector.multi_reduction <add>, %2, %cst_5 [0] : vector<16x128xf32> to vector<128xf32>
    %6 = vector.shape_cast %5 : vector<128xf32> to vector<1x128xf32>
    %7 = arith.mulf %2, %2 : vector<16x128xf32>
    %cst_6 = arith.constant dense<0.000000e+00> : vector<128xf32>
    %8 = vector.multi_reduction <add>, %7, %cst_6 [0] : vector<16x128xf32> to vector<128xf32>
    %9 = vector.shape_cast %8 : vector<128xf32> to vector<1x128xf32>
    %10 = tpu.iota {dimensions = array<i32: 0>} : vector<8x128xi32>
    %c0_i32 = arith.constant 0 : i32
    %11 = vector.broadcast %c0_i32 : i32 to vector<8x128xi32>
    %12 = arith.cmpi eq, %10, %11 : vector<8x128xi32>
    %13 = vector.shape_cast %6 : vector<1x128xf32> to vector<1x128xf32>
    %14 = vector.broadcast %13 : vector<1x128xf32> to vector<8x128xf32>
    %c1_i32 = arith.constant 1 : i32
    %15 = vector.broadcast %c1_i32 : i32 to vector<8x128xi32>
    %16 = arith.cmpi eq, %10, %15 : vector<8x128xi32>
    %17 = vector.shape_cast %9 : vector<1x128xf32> to vector<1x128xf32>
    %18 = vector.broadcast %17 : vector<1x128xf32> to vector<8x128xf32>
    %cst_7 = arith.constant 0.000000e+00 : f32
    %19 = vector.broadcast %cst_7 : f32 to vector<8x128xf32>
    %20 = arith.select %16, %18, %19 : vector<8x128xi1>, vector<8x128xf32>
    %21 = arith.select %12, %14, %20 : vector<8x128xi1>, vector<8x128xf32>
    %c0_8 = arith.constant 0 : index
    %c0_9 = arith.constant 0 : index
    %22 = vector.load %arg5[%c0_8, %c0_9] : memref<8x128xf32, #tpu.memory_space<vmem>>, vector<8x128xf32>
    tpu.vector_store %arg5[%c0_8, %c0_9], %21 {strides = array<i32>} : memref<8x128xf32, #tpu.memory_space<vmem>>, vector<8x128xf32>,
    return
  }
  func.func @transform_0(%arg0: i32, %arg1: i32) -> (i32, i32) {
    %c0_i32 = arith.constant 0 : i32
    %c0_i32_0 = arith.constant 0 : i32
    return %arg0, %c0_i32 : i32, i32
  }
  func.func @transform_1(%arg0: i32, %arg1: i32) -> (i32, i32) {
    %c0_i32 = arith.constant 0 : i32
    %c0_i32_0 = arith.constant 0 : i32
    return %c0_i32, %arg1 : i32, i32
  }
  func.func @transform_2(%arg0: i32, %arg1: i32) -> (i32, i32) {
    %c0_i32 = arith.constant 0 : i32
    return %arg0, %arg1 : i32, i32
  }
  func.func @transform_3(%arg0: i32, %arg1: i32) -> (i32, i32) {
    %c0_i32 = arith.constant 0 : i32
    return %arg0, %arg1 : i32, i32
  }
}

module attributes {stable_mosaic.version = 11 : i64} {
  func.func @_bn_lrelu_kernel(%arg0: i32, %arg1: i32, %arg2: memref<16x128xbf16, #tpu.memory_space<vmem>>, %arg3: memref<1x128xf32, #tpu.memory_space<vmem>>, %arg4: memref<1x128xf32, #tpu.memory_space<vmem>>, %arg5: memref<16x128xf32, #tpu.memory_space<vmem>>) attributes {dimension_semantics = [#tpu.dimension_semantics<parallel>, #tpu.dimension_semantics<parallel>], iteration_bounds = array<i64: 2, 1>, scalar_prefetch = 0 : i64, scratch_operands = 0 : i64, tpu.core_type = #tpu.core_type<tc>, window_params = [{transform_indices = @transform_0, window_bounds = array<i64: 16, 128>}, {transform_indices = @transform_1, window_bounds = array<i64: 1, 128>}, {transform_indices = @transform_2, window_bounds = array<i64: 1, 128>}, {transform_indices = @transform_3, window_bounds = array<i64: 16, 128>}]} {
    %c0 = arith.constant 0 : index
    %c0_0 = arith.constant 0 : index
    %0 = vector.load %arg2[%c0, %c0_0] : memref<16x128xbf16, #tpu.memory_space<vmem>>, vector<16x128xbf16>
    %1 = arith.extf %0 : vector<16x128xbf16> to vector<16x128xf32>
    %c0_1 = arith.constant 0 : index
    %c0_2 = arith.constant 0 : index
    %2 = vector.load %arg3[%c0_1, %c0_2] : memref<1x128xf32, #tpu.memory_space<vmem>>, vector<1x128xf32>
    %3 = vector.broadcast %2 : vector<1x128xf32> to vector<16x128xf32>
    %4 = arith.mulf %1, %3 : vector<16x128xf32>
    %c0_3 = arith.constant 0 : index
    %c0_4 = arith.constant 0 : index
    %5 = vector.load %arg4[%c0_3, %c0_4] : memref<1x128xf32, #tpu.memory_space<vmem>>, vector<1x128xf32>
    %6 = vector.broadcast %5 : vector<1x128xf32> to vector<16x128xf32>
    %7 = arith.addf %4, %6 : vector<16x128xf32>
    %cst = arith.constant 0.000000e+00 : f32
    %8 = vector.broadcast %cst : f32 to vector<16x128xf32>
    %9 = arith.cmpf oge, %7, %8 : vector<16x128xf32>
    %cst_5 = arith.constant 1.000000e-01 : f32
    %10 = vector.broadcast %cst_5 : f32 to vector<16x128xf32>
    %11 = arith.mulf %10, %7 : vector<16x128xf32>
    %12 = arith.select %9, %7, %11 : vector<16x128xi1>, vector<16x128xf32>
    %c0_6 = arith.constant 0 : index
    %c0_7 = arith.constant 0 : index
    %13 = vector.load %arg5[%c0_6, %c0_7] : memref<16x128xf32, #tpu.memory_space<vmem>>, vector<16x128xf32>
    tpu.vector_store %arg5[%c0_6, %c0_7], %12 {strides = array<i32>} : memref<16x128xf32, #tpu.memory_space<vmem>>, vector<16x128xf32>,
    return
  }
  func.func @transform_0(%arg0: i32, %arg1: i32) -> (i32, i32) {
    %c0_i32 = arith.constant 0 : i32
    return %arg0, %arg1 : i32, i32
  }
  func.func @transform_1(%arg0: i32, %arg1: i32) -> (i32, i32) {
    %c0_i32 = arith.constant 0 : i32
    %c0_i32_0 = arith.constant 0 : i32
    return %c0_i32, %arg1 : i32, i32
  }
  func.func @transform_2(%arg0: i32, %arg1: i32) -> (i32, i32) {
    %c0_i32 = arith.constant 0 : i32
    %c0_i32_0 = arith.constant 0 : i32
    return %c0_i32, %arg1 : i32, i32
  }
  func.func @transform_3(%arg0: i32, %arg1: i32) -> (i32, i32) {
    %c0_i32 = arith.constant 0 : i32
    return %arg0, %arg1 : i32, i32
  }
}

</mosaic_0001>

<llo_original>
// kernel: neg.1
$region0: #{neg.1}
  #allocation0 [shape = 's32[1]{0}', space=sflag, size = 0x4, scoped, tag = 'scoped memory for neg.1']
  %s0 = inlined_call_operand.vmem [shape: f32[8,4,3,3], index: 0, kind: input, shape index: {}]
  %s1 = inlined_call_operand.vmem [shape: f32[8,4,3,3], index: 1, kind: output, shape index: {}]
  %v2 = vld [vmem:[%s0] sm:$0xf]
  %3 = xla_tuple %v2
  %4 = xla_tuple %3
  %v5 = vxor.u32 %v2, 2147483648
  %6 = xla_tuple %v5
  %7 = vst [vmem:[%s1] sm:$0xf] %v5
  %s8 = scalar_lea.vmem %s0, 12
  %v9 = vld [vmem:[%s8] sm:$0xf]
  %10 = xla_tuple %v9
  %11 = xla_tuple %10
  %v12 = vxor.u32 %v9, 2147483648
  %13 = xla_tuple %v12
  %s14 = scalar_lea.vmem %s1, 12
  %15 = vst [vmem:[%s14] sm:$0xf] %v12
  %s16 = scalar_lea.vmem %s0, 24
  %v17 = vld [vmem:[%s16] sm:$0xf]
  %18 = xla_tuple %v17
  %19 = xla_tuple %18
  %v20 = vxor.u32 %v17, 2147483648
  %21 = xla_tuple %v20
  %s22 = scalar_lea.vmem %s1, 24
  %23 = vst [vmem:[%s22] sm:$0xf] %v20
  %s24 = scalar_lea.vmem %s0, 4
  %v25 = vld [vmem:[%s24] sm:$0xf]
  %26 = xla_tuple %v25
  %27 = xla_tuple %26
  %v28 = vxor.u32 %v25, 2147483648
  %29 = xla_tuple %v28
  %s30 = scalar_lea.vmem %s1, 4
  %31 = vst [vmem:[%s30] sm:$0xf] %v28
  %s32 = scalar_lea.vmem %s0, 16
  %v33 = vld [vmem:[%s32] sm:$0xf]
  %34 = xla_tuple %v33
  %35 = xla_tuple %34
  %v36 = vxor.u32 %v33, 2147483648
  %37 = xla_tuple %v36
  %s38 = scalar_lea.vmem %s1, 16
  %39 = vst [vmem:[%s38] sm:$0xf] %v36
  %s40 = scalar_lea.vmem %s0, 28
  %v41 = vld [vmem:[%s40] sm:$0xf]
  %42 = xla_tuple %v41
  %43 = xla_tuple %42
  %v44 = vxor.u32 %v41, 2147483648
  %45 = xla_tuple %v44
  %s46 = scalar_lea.vmem %s1, 28
  %47 = vst [vmem:[%s46] sm:$0xf] %v44
  %s48 = scalar_lea.vmem %s0, 8
  %v49 = vld [vmem:[%s48] sm:$0xf]
  %50 = xla_tuple %v49
  %51 = xla_tuple %50
  %v52 = vxor.u32 %v49, 2147483648
  %53 = xla_tuple %v52
  %s54 = scalar_lea.vmem %s1, 8
  %55 = vst [vmem:[%s54] sm:$0xf] %v52
  %s56 = scalar_lea.vmem %s0, 20
  %v57 = vld [vmem:[%s56] sm:$0xf]
  %58 = xla_tuple %v57
  %59 = xla_tuple %58
  %v60 = vxor.u32 %v57, 2147483648
  %61 = xla_tuple %v60
  %s62 = scalar_lea.vmem %s1, 20
  %63 = vst [vmem:[%s62] sm:$0xf] %v60
  %s64 = scalar_lea.vmem %s0, 32
  %v65 = vld [vmem:[%s64] sm:$0xf]
  %66 = xla_tuple %v65
  %67 = xla_tuple %66
  %v68 = vxor.u32 %v65, 2147483648
  %69 = xla_tuple %v68
  %s70 = scalar_lea.vmem %s1, 32
  %71 = vst [vmem:[%s70] sm:$0xf] %v68

// kernel: mul.4
$region0: #{mul.4}
  %s0 = inlined_call_operand.vmem [shape: f32[16,2,2,2,2,8], index: 0, kind: input, shape index: {}]
  %s1 = inlined_call_operand.vmem [shape: f32[64,32], index: 1, kind: output, shape index: {}]
  $region1: #{mul.4} parent=0
    #allocation0 [shape = 'u8[524288]{0}', space=vmem, size = 0x80000, scoped, tag = 'scoped mem for input reshape']
    %s3 = sshllo.u32 0, 2
    %s4 = smul.addr 2, 127
    %s5 = scalar_lea.vmem %s0, %s4
    %v6 = vld [vmem:[%s5] sm:%s3]
    %s7 = scalar_lea.vmem [#allocation0], 1016
    %8 = vst [vmem:[%s7] sm:%s3] %v6
    %s9 = smul.addr 2, 126
    %s10 = scalar_lea.vmem %s0, %s9
    %v11 = vld [vmem:[%s10] sm:%s3]
    %s12 = scalar_lea.vmem [#allocation0], 1008
    %13 = vst [vmem:[%s12] sm:%s3] %v11
    %s14 = smul.addr 2, 125
    %s15 = scalar_lea.vmem %s0, %s14
    %v16 = vld [vmem:[%s15] sm:%s3]
    %s17 = scalar_lea.vmem [#allocation0], 1000
    %18 = vst [vmem:[%s17] sm:%s3] %v16
    %s19 = smul.addr 2, 124
    %s20 = scalar_lea.vmem %s0, %s19
    %v21 = vld [vmem:[%s20] sm:%s3]
    %s22 = scalar_lea.vmem [#allocation0], 992
    %23 = vst [vmem:[%s22] sm:%s3] %v21
    %s24 = smul.addr 2, 123
    %s25 = scalar_lea.vmem %s0, %s24
    %v26 = vld [vmem:[%s25] sm:%s3]
    %s27 = scalar_lea.vmem [#allocation0], 984
    %28 = vst [vmem:[%s27] sm:%s3] %v26
    %s29 = smul.addr 2, 122
    %s30 = scalar_lea.vmem %s0, %s29
    %v31 = vld [vmem:[%s30] sm:%s3]
    %s32 = scalar_lea.vmem [#allocation0], 976
    %33 = vst [vmem:[%s32] sm:%s3] %v31
    %s34 = smul.addr 2, 121
    %s35 = scalar_lea.vmem %s0, %s34
    %v36 = vld [vmem:[%s35] sm:%s3]
    %s37 = scalar_lea.vmem [#allocation0], 968
    %38 = vst [vmem:[%s37] sm:%s3] %v36
    %s39 = smul.addr 2, 120
    %s40 = scalar_lea.vmem %s0, %s39
    %v41 = vld [vmem:[%s40] sm:%s3]
    %s42 = scalar_lea.vmem [#allocation0], 960
    %43 = vst [vmem:[%s42] sm:%s3] %v41
    %s44 = smul.addr 2, 119
    %s45 = scalar_lea.vmem %s0, %s44
    %v46 = vld [vmem:[%s45] sm:%s3]
    %s47 = scalar_lea.vmem [#allocation0], 952
    %48 = vst [vmem:[%s47] sm:%s3] %v46
    %s49 = smul.addr 2, 118
    %s50 = scalar_lea.vmem %s0, %s49
    %v51 = vld [vmem:[%s50] sm:%s3]
    %s52 = scalar_lea.vmem [#allocation0], 944
    %53 = vst [vmem:[%s52] sm:%s3] %v51
    %s54 = smul.addr 2, 117
    %s55 = scalar_lea.vmem %s0, %s54
    %v56 = vld [vmem:[%s55] sm:%s3]
    %s57 = scalar_lea.vmem [#allocation0], 936
    %58 = vst [vmem:[%s57] sm:%s3] %v56
    %s59 = smul.addr 2, 116
    %s60 = scalar_lea.vmem %s0, %s59
    %v61 = vld [vmem:[%s60] sm:%s3]
    %s62 = scalar_lea.vmem [#allocation0], 928
    %63 = vst [vmem:[%s62] sm:%s3] %v61
    %s64 = smul.addr 2, 115
    %s65 = scalar_lea.vmem %s0, %s64
    %v66 = vld [vmem:[%s65] sm:%s3]
    %s67 = scalar_lea.vmem [#allocation0], 920
    %68 = vst [vmem:[%s67] sm:%s3] %v66
    %s69 = smul.addr 2, 114
    %s70 = scalar_lea.vmem %s0, %s69
    %v71 = vld [vmem:[%s70] sm:%s3]
    %s72 = scalar_lea.vmem [#allocation0], 912
    %73 = vst [vmem:[%s72] sm:%s3] %v71
    %s74 = smul.addr 2, 113
    %s75 = scalar_lea.vmem %s0, %s74
    %v76 = vld [vmem:[%s75] sm:%s3]
    %s77 = scalar_lea.vmem [#allocation0], 904
    %78 = vst [vmem:[%s77] sm:%s3] %v76
    %s79 = smul.addr 2, 112
    %s80 = scalar_lea.vmem %s0, %s79
    %v81 = vld [vmem:[%s80] sm:%s3]
    %s82 = scalar_lea.vmem [#allocation0], 896
    %83 = vst [vmem:[%s82] sm:%s3] %v81
    %s84 = smul.addr 2, 111
    %s85 = scalar_lea.vmem %s0, %s84
    %v86 = vld [vmem:[%s85] sm:%s3]
    %s87 = scalar_lea.vmem [#allocation0], 888
    %88 = vst [vmem:[%s87] sm:%s3] %v86
    %s89 = smul.addr 2, 110
    %s90 = scalar_lea.vmem %s0, %s89
    %v91 = vld [vmem:[%s90] sm:%s3]
    %s92 = scalar_lea.vmem [#allocation0], 880
    %93 = vst [vmem:[%s92] sm:%s3] %v91
    %s94 = smul.addr 2, 109
    %s95 = scalar_lea.vmem %s0, %s94
    %v96 = vld [vmem:[%s95] sm:%s3]
    %s97 = scalar_lea.vmem [#allocation0], 872
    %98 = vst [vmem:[%s97] sm:%s3] %v96
    %s99 = smul.addr 2, 108
    %s100 = scalar_lea.vmem %s0, %s99
    %v101 = vld [vmem:[%s100] sm:%s3]
    %s102 = scalar_lea.vmem [#allocation0], 864
    %103 = vst [vmem:[%s102] sm:%s3] %v101
    %s104 = smul.addr 2, 107
    %s105 = scalar_lea.vmem %s0, %s104
    %v106 = vld [vmem:[%s105] sm:%s3]
    %s107 = scalar_lea.vmem [#allocation0], 856
    %108 = vst [vmem:[%s107] sm:%s3] %v106
    %s109 = smul.addr 2, 106
    %s110 = scalar_lea.vmem %s0, %s109
    %v111 = vld [vmem:[%s110] sm:%s3]
    %s112 = scalar_lea.vmem [#allocation0], 848
    %113 = vst [vmem:[%s112] sm:%s3] %v111
    %s114 = smul.addr 2, 105
    %s115 = scalar_lea.vmem %s0, %s114
    %v116 = vld [vmem:[%s115] sm:%s3]
    %s117 = scalar_lea.vmem [#allocation0], 840
    %118 = vst [vmem:[%s117] sm:%s3] %v116
    %s119 = smul.addr 2, 104
    %s120 = scalar_lea.vmem %s0, %s119
    %v121 = vld [vmem:[%s120] sm:%s3]
    %s122 = scalar_lea.vmem [#allocation0], 832
    %123 = vst [vmem:[%s122] sm:%s3] %v121
    %s124 = smul.addr 2, 103
    %s125 = scalar_lea.vmem %s0, %s124
    %v126 = vld [vmem:[%s125] sm:%s3]
    %s127 = scalar_lea.vmem [#allocation0], 824
    %128 = vst [vmem:[%s127] sm:%s3] %v126
    %s129 = smul.addr 2, 102
    %s130 = scalar_lea.vmem %s0, %s129
    %v131 = vld [vmem:[%s130] sm:%s3]
    %s132 = scalar_lea.vmem [#allocation0], 816
    %133 = vst [vmem:[%s132] sm:%s3] %v131
    %s134 = smul.addr 2, 101
    %s135 = scalar_lea.vmem %s0, %s134
    %v136 = vld [vmem:[%s135] sm:%s3]
    %s137 = scalar_lea.vmem [#allocation0], 808
    %138 = vst [vmem:[%s137] sm:%s3] %v136
    %s139 = smul.addr 2, 100
    %s140 = scalar_lea.vmem %s0, %s139
    %v141 = vld [vmem:[%s140] sm:%s3]
    %s142 = scalar_lea.vmem [#allocation0], 800
    %143 = vst [vmem:[%s142] sm:%s3] %v141
    %s144 = smul.addr 2, 99
    %s145 = scalar_lea.vmem %s0, %s144
    %v146 = vld [vmem:[%s145] sm:%s3]
    %s147 = scalar_lea.vmem [#allocation0], 792
    %148 = vst [vmem:[%s147] sm:%s3] %v146
    %s149 = smul.addr 2, 98
    %s150 = scalar_lea.vmem %s0, %s149
    %v151 = vld [vmem:[%s150] sm:%s3]
    %s152 = scalar_lea.vmem [#allocation0], 784
    %153 = vst [vmem:[%s152] sm:%s3] %v151
    %s154 = smul.addr 2, 97
    %s155 = scalar_lea.vmem %s0, %s154
    %v156 = vld [vmem:[%s155] sm:%s3]
    %s157 = scalar_lea.vmem [#allocation0], 776
    %158 = vst [vmem:[%s157] sm:%s3] %v156
    %s159 = smul.addr 2, 96
    %s160 = scalar_lea.vmem %s0, %s159
    %v161 = vld [vmem:[%s160] sm:%s3]
    %s162 = scalar_lea.vmem [#allocation0], 768
    %163 = vst [vmem:[%s162] sm:%s3] %v161
    %s164 = smul.addr 2, 95
    %s165 = scalar_lea.vmem %s0, %s164
    %v166 = vld [vmem:[%s165] sm:%s3]
    %s167 = scalar_lea.vmem [#allocation0], 760
    %168 = vst [vmem:[%s167] sm:%s3] %v166
    %s169 = smul.addr 2, 94
    %s170 = scalar_lea.vmem %s0, %s169
    %v171 = vld [vmem:[%s170] sm:%s3]
    %s172 = scalar_lea.vmem [#allocation0], 752
    %173 = vst [vmem:[%s172] sm:%s3] %v171
    %s174 = smul.addr 2, 93
    %s175 = scalar_lea.vmem %s0, %s174
    %v176 = vld [vmem:[%s175] sm:%s3]
    %s177 = scalar_lea.vmem [#allocation0], 744
    %178 = vst [vmem:[%s177] sm:%s3] %v176
    %s179 = smul.addr 2, 92
    %s180 = scalar_lea.vmem %s0, %s179
    %v181 = vld [vmem:[%s180] sm:%s3]
    %s182 = scalar_lea.vmem [#allocation0], 736
    %183 = vst [vmem:[%s182] sm:%s3] %v181
    %s184 = smul.addr 2, 91
    %s185 = scalar_lea.vmem %s0, %s184
    %v186 = vld [vmem:[%s185] sm:%s3]
    %s187 = scalar_lea.vmem [#allocation0], 728
    %188 = vst [vmem:[%s187] sm:%s3] %v186
    %s189 = smul.addr 2, 90
    %s190 = scalar_lea.vmem %s0, %s189
    %v191 = vld [vmem:[%s190] sm:%s3]
    %s192 = scalar_lea.vmem [#allocation0], 720
    %193 = vst [vmem:[%s192] sm:%s3] %v191
    %s194 = smul.addr 2, 89
    %s195 = scalar_lea.vmem %s0, %s194
    %v196 = vld [vmem:[%s195] sm:%s3]
    %s197 = scalar_lea.vmem [#allocation0], 712
    %198 = vst [vmem:[%s197] sm:%s3] %v196
    %s199 = smul.addr 2, 88
    %s200 = scalar_lea.vmem %s0, %s199
    %v201 = vld [vmem:[%s200] sm:%s3]
    %s202 = scalar_lea.vmem [#allocation0], 704
    %203 = vst [vmem:[%s202] sm:%s3] %v201
    %s204 = smul.addr 2, 87
    %s205 = scalar_lea.vmem %s0, %s204
    %v206 = vld [vmem:[%s205] sm:%s3]
    %s207 = scalar_lea.vmem [#allocation0], 696
    %208 = vst [vmem:[%s207] sm:%s3] %v206
    %s209 = smul.addr 2, 86
    %s210 = scalar_lea.vmem %s0, %s209
    %v211 = vld [vmem:[%s210] sm:%s3]
    %s212 = scalar_lea.vmem [#allocation0], 688
    %213 = vst [vmem:[%s212] sm:%s3] %v211
    %s214 = smul.addr 2, 85
    %s215 = scalar_lea.vmem %s0, %s214
    %v216 = vld [vmem:[%s215] sm:%s3]
    %s217 = scalar_lea.vmem [#allocation0], 680
    %218 = vst [vmem:[%s217] sm:%s3] %v216
    %s219 = smul.addr 2, 84
    %s220 = scalar_lea.vmem %s0, %s219
    %v221 = vld [vmem:[%s220] sm:%s3]
    %s222 = scalar_lea.vmem [#allocation0], 672
    %223 = vst [vmem:[%s222] sm:%s3] %v221
    %s224 = smul.addr 2, 83
    %s225 = scalar_lea.vmem %s0, %s224
    %v226 = vld [vmem:[%s225] sm:%s3]
    %s227 = scalar_lea.vmem [#allocation0], 664
    %228 = vst [vmem:[%s227] sm:%s3] %v226
    %s229 = smul.addr 2, 82
    %s230 = scalar_lea.vmem %s0, %s229
    %v231 = vld [vmem:[%s230] sm:%s3]
    %s232 = scalar_lea.vmem [#allocation0], 656
    %233 = vst [vmem:[%s232] sm:%s3] %v231
    %s234 = smul.addr 2, 81
    %s235 = scalar_lea.vmem %s0, %s234
    %v236 = vld [vmem:[%s235] sm:%s3]
    %s237 = scalar_lea.vmem [#allocation0], 648
    %238 = vst [vmem:[%s237] sm:%s3] %v236
    %s239 = smul.addr 2, 80
    %s240 = scalar_lea.vmem %s0, %s239
    %v241 = vld [vmem:[%s240] sm:%s3]
    %s242 = scalar_lea.vmem [#allocation0], 640
    %243 = vst [vmem:[%s242] sm:%s3] %v241
    %s244 = smul.addr 2, 79
    %s245 = scalar_lea.vmem %s0, %s244
    %v246 = vld [vmem:[%s245] sm:%s3]
    %s247 = scalar_lea.vmem [#allocation0], 632
    %248 = vst [vmem:[%s247] sm:%s3] %v246
    %s249 = smul.addr 2, 78
    %s250 = scalar_lea.vmem %s0, %s249
    %v251 = vld [vmem:[%s250] sm:%s3]
    %s252 = scalar_lea.vmem [#allocation0], 624
    %253 = vst [vmem:[%s252] sm:%s3] %v251
    %s254 = smul.addr 2, 77
    %s255 = scalar_lea.vmem %s0, %s254
    %v256 = vld [vmem:[%s255] sm:%s3]
    %s257 = scalar_lea.vmem [#allocation0], 616
    %258 = vst [vmem:[%s257] sm:%s3] %v256
    %s259 = smul.addr 2, 76
    %s260 = scalar_lea.vmem %s0, %s259
    %v261 = vld [vmem:[%s260] sm:%s3]
    %s262 = scalar_lea.vmem [#allocation0], 608
    %263 = vst [vmem:[%s262] sm:%s3] %v261
    %s264 = smul.addr 2, 75
    %s265 = scalar_lea.vmem %s0, %s264
    %v266 = vld [vmem:[%s265] sm:%s3]
    %s267 = scalar_lea.vmem [#allocation0], 600
    %268 = vst [vmem:[%s267] sm:%s3] %v266
    %s269 = smul.addr 2, 74
    %s270 = scalar_lea.vmem %s0, %s269
    %v271 = vld [vmem:[%s270] sm:%s3]
    %s272 = scalar_lea.vmem [#allocation0], 592
    %273 = vst [vmem:[%s272] sm:%s3] %v271
    %s274 = smul.addr 2, 73
    %s275 = scalar_lea.vmem %s0, %s274
    %v276 = vld [vmem:[%s275] sm:%s3]
    %s277 = scalar_lea.vmem [#allocation0], 584
    %278 = vst [vmem:[%s277] sm:%s3] %v276
    %s279 = smul.addr 2, 72
    %s280 = scalar_lea.vmem %s0, %s279
    %v281 = vld [vmem:[%s280] sm:%s3]
    %s282 = scalar_lea.vmem [#allocation0], 576
    %283 = vst [vmem:[%s282] sm:%s3] %v281
    %s284 = smul.addr 2, 71
    %s285 = scalar_lea.vmem %s0, %s284
    %v286 = vld [vmem:[%s285] sm:%s3]
    %s287 = scalar_lea.vmem [#allocation0], 568
    %288 = vst [vmem:[%s287] sm:%s3] %v286
    %s289 = smul.addr 2, 70
    %s290 = scalar_lea.vmem %s0, %s289
    %v291 = vld [vmem:[%s290] sm:%s3]
    %s292 = scalar_lea.vmem [#allocation0], 560
    %293 = vst [vmem:[%s292] sm:%s3] %v291
    %s294 = smul.addr 2, 69
    %s295 = scalar_lea.vmem %s0, %s294
    %v296 = vld [vmem:[%s295] sm:%s3]
    %s297 = scalar_lea.vmem [#allocation0], 552
    %298 = vst [vmem:[%s297] sm:%s3] %v296
    %s299 = smul.addr 2, 68
    %s300 = scalar_lea.vmem %s0, %s299
    %v301 = vld [vmem:[%s300] sm:%s3]
    %s302 = scalar_lea.vmem [#allocation0], 544
    %303 = vst [vmem:[%s302] sm:%s3] %v301
    %s304 = smul.addr 2, 67
    %s305 = scalar_lea.vmem %s0, %s304
    %v306 = vld [vmem:[%s305] sm:%s3]
    %s307 = scalar_lea.vmem [#allocation0], 536
    %308 = vst [vmem:[%s307] sm:%s3] %v306
    %s309 = smul.addr 2, 66
    %s310 = scalar_lea.vmem %s0, %s309
    %v311 = vld [vmem:[%s310] sm:%s3]
    %s312 = scalar_lea.vmem [#allocation0], 528
    %313 = vst [vmem:[%s312] sm:%s3] %v311
    %s314 = smul.addr 2, 65
    %s315 = scalar_lea.vmem %s0, %s314
    %v316 = vld [vmem:[%s315] sm:%s3]
    %s317 = scalar_lea.vmem [#allocation0], 520
    %318 = vst [vmem:[%s317] sm:%s3] %v316
    %s319 = smul.addr 2, 64
    %s320 = scalar_lea.vmem %s0, %s319
    %v321 = vld [vmem:[%s320] sm:%s3]
    %s322 = scalar_lea.vmem [#allocation0], 512
    %323 = vst [vmem:[%s322] sm:%s3] %v321
    %s324 = smul.addr 2, 63
    %s325 = scalar_lea.vmem %s0, %s324
    %v326 = vld [vmem:[%s325] sm:%s3]
    %s327 = scalar_lea.vmem [#allocation0], 504
    %328 = vst [vmem:[%s327] sm:%s3] %v326
    %s329 = smul.addr 2, 62
    %s330 = scalar_lea.vmem %s0, %s329
    %v331 = vld [vmem:[%s330] sm:%s3]
    %s332 = scalar_lea.vmem [#allocation0], 496
    %333 = vst [vmem:[%s332] sm:%s3] %v331
    %s334 = smul.addr 2, 61
    %s335 = scalar_lea.vmem %s0, %s334
    %v336 = vld [vmem:[%s335] sm:%s3]
    %s337 = scalar_lea.vmem [#allocation0], 488
    %338 = vst [vmem:[%s337] sm:%s3] %v336
    %s339 = smul.addr 2, 60
    %s340 = scalar_lea.vmem %s0, %s339
    %v341 = vld [vmem:[%s340] sm:%s3]
    %s342 = scalar_lea.vmem [#allocation0], 480
    %343 = vst [vmem:[%s342] sm:%s3] %v341
    %s344 = smul.addr 2, 59
    %s345 = scalar_lea.vmem %s0, %s344
    %v346 = vld [vmem:[%s345] sm:%s3]
    %s347 = scalar_lea.vmem [#allocation0], 472
    %348 = vst [vmem:[%s347] sm:%s3] %v346
    %s349 = smul.addr 2, 58
    %s350 = scalar_lea.vmem %s0, %s349
    %v351 = vld [vmem:[%s350] sm:%s3]
    %s352 = scalar_lea.vmem [#allocation0], 464
    %353 = vst [vmem:[%s352] sm:%s3] %v351
    %s354 = smul.addr 2, 57
    %s355 = scalar_lea.vmem %s0, %s354
    %v356 = vld [vmem:[%s355] sm:%s3]
    %s357 = scalar_lea.vmem [#allocation0], 456
    %358 = vst [vmem:[%s357] sm:%s3] %v356
    %s359 = smul.addr 2, 56
    %s360 = scalar_lea.vmem %s0, %s359
    %v361 = vld [vmem:[%s360] sm:%s3]
    %s362 = scalar_lea.vmem [#allocation0], 448
    %363 = vst [vmem:[%s362] sm:%s3] %v361
    %s364 = smul.addr 2, 55
    %s365 = scalar_lea.vmem %s0, %s364
    %v366 = vld [vmem:[%s365] sm:%s3]
    %s367 = scalar_lea.vmem [#allocation0], 440
    %368 = vst [vmem:[%s367] sm:%s3] %v366
    %s369 = smul.addr 2, 54
    %s370 = scalar_lea.vmem %s0, %s369
    %v371 = vld [vmem:[%s370] sm:%s3]
    %s372 = scalar_lea.vmem [#allocation0], 432
    %373 = vst [vmem:[%s372] sm:%s3] %v371
    %s374 = smul.addr 2, 53
    %s375 = scalar_lea.vmem %s0, %s374
    %v376 = vld [vmem:[%s375] sm:%s3]
    %s377 = scalar_lea.vmem [#allocation0], 424
    %378 = vst [vmem:[%s377] sm:%s3] %v376
    %s379 = smul.addr 2, 52
    %s380 = scalar_lea.vmem %s0, %s379
    %v381 = vld [vmem:[%s380] sm:%s3]
    %s382 = scalar_lea.vmem [#allocation0], 416
    %383 = vst [vmem:[%s382] sm:%s3] %v381
    %s384 = smul.addr 2, 51
    %s385 = scalar_lea.vmem %s0, %s384
    %v386 = vld [vmem:[%s385] sm:%s3]
    %s387 = scalar_lea.vmem [#allocation0], 408
    %388 = vst [vmem:[%s387] sm:%s3] %v386
    %s389 = smul.addr 2, 50
    %s390 = scalar_lea.vmem %s0, %s389
    %v391 = vld [vmem:[%s390] sm:%s3]
    %s392 = scalar_lea.vmem [#allocation0], 400
    %393 = vst [vmem:[%s392] sm:%s3] %v391
    %s394 = smul.addr 2, 49
    %s395 = scalar_lea.vmem %s0, %s394
    %v396 = vld [vmem:[%s395] sm:%s3]
    %s397 = scalar_lea.vmem [#allocation0], 392
    %398 = vst [vmem:[%s397] sm:%s3] %v396
    %s399 = smul.addr 2, 48
    %s400 = scalar_lea.vmem %s0, %s399
    %v401 = vld [vmem:[%s400] sm:%s3]
    %s402 = scalar_lea.vmem [#allocation0], 384
    %403 = vst [vmem:[%s402] sm:%s3] %v401
    %s404 = smul.addr 2, 47
    %s405 = scalar_lea.vmem %s0, %s404
    %v406 = vld [vmem:[%s405] sm:%s3]
    %s407 = scalar_lea.vmem [#allocation0], 376
    %408 = vst [vmem:[%s407] sm:%s3] %v406
    %s409 = smul.addr 2, 46
    %s410 = scalar_lea.vmem %s0, %s409
    %v411 = vld [vmem:[%s410] sm:%s3]
    %s412 = scalar_lea.vmem [#allocation0], 368
    %413 = vst [vmem:[%s412] sm:%s3] %v411
    %s414 = smul.addr 2, 45
    %s415 = scalar_lea.vmem %s0, %s414
    %v416 = vld [vmem:[%s415] sm:%s3]
    %s417 = scalar_lea.vmem [#allocation0], 360
    %418 = vst [vmem:[%s417] sm:%s3] %v416
    %s419 = smul.addr 2, 44
    %s420 = scalar_lea.vmem %s0, %s419
    %v421 = vld [vmem:[%s420] sm:%s3]
    %s422 = scalar_lea.vmem [#allocation0], 352
    %423 = vst [vmem:[%s422] sm:%s3] %v421
    %s424 = smul.addr 2, 43
    %s425 = scalar_lea.vmem %s0, %s424
    %v426 = vld [vmem:[%s425] sm:%s3]
    %s427 = scalar_lea.vmem [#allocation0], 344
    %428 = vst [vmem:[%s427] sm:%s3] %v426
    %s429 = smul.addr 2, 42
    %s430 = scalar_lea.vmem %s0, %s429
    %v431 = vld [vmem:[%s430] sm:%s3]
    %s432 = scalar_lea.vmem [#allocation0], 336
    %433 = vst [vmem:[%s432] sm:%s3] %v431
    %s434 = smul.addr 2, 41
    %s435 = scalar_lea.vmem %s0, %s434
    %v436 = vld [vmem:[%s435] sm:%s3]
    %s437 = scalar_lea.vmem [#allocation0], 328
    %438 = vst [vmem:[%s437] sm:%s3] %v436
    %s439 = smul.addr 2, 40
    %s440 = scalar_lea.vmem %s0, %s439
    %v441 = vld [vmem:[%s440] sm:%s3]
    %s442 = scalar_lea.vmem [#allocation0], 320
    %443 = vst [vmem:[%s442] sm:%s3] %v441
    %s444 = smul.addr 2, 39
    %s445 = scalar_lea.vmem %s0, %s444
    %v446 = vld [vmem:[%s445] sm:%s3]
    %s447 = scalar_lea.vmem [#allocation0], 312
    %448 = vst [vmem:[%s447] sm:%s3] %v446
    %s449 = smul.addr 2, 38
    %s450 = scalar_lea.vmem %s0, %s449
    %v451 = vld [vmem:[%s450] sm:%s3]
    %s452 = scalar_lea.vmem [#allocation0], 304
    %453 = vst [vmem:[%s452] sm:%s3] %v451
    %s454 = smul.addr 2, 37
    %s455 = scalar_lea.vmem %s0, %s454
    %v456 = vld [vmem:[%s455] sm:%s3]
    %s457 = scalar_lea.vmem [#allocation0], 296
    %458 = vst [vmem:[%s457] sm:%s3] %v456
    %s459 = smul.addr 2, 36
    %s460 = scalar_lea.vmem %s0, %s459
    %v461 = vld [vmem:[%s460] sm:%s3]
    %s462 = scalar_lea.vmem [#allocation0], 288
    %463 = vst [vmem:[%s462] sm:%s3] %v461
    %s464 = smul.addr 2, 35
    %s465 = scalar_lea.vmem %s0, %s464
    %v466 = vld [vmem:[%s465] sm:%s3]
    %s467 = scalar_lea.vmem [#allocation0], 280
    %468 = vst [vmem:[%s467] sm:%s3] %v466
    %s469 = smul.addr 2, 34
    %s470 = scalar_lea.vmem %s0, %s469
    %v471 = vld [vmem:[%s470] sm:%s3]
    %s472 = scalar_lea.vmem [#allocation0], 272
    %473 = vst [vmem:[%s472] sm:%s3] %v471
    %s474 = smul.addr 2, 33
    %s475 = scalar_lea.vmem %s0, %s474
    %v476 = vld [vmem:[%s475] sm:%s3]
    %s477 = scalar_lea.vmem [#allocation0], 264
    %478 = vst [vmem:[%s477] sm:%s3] %v476
    %s479 = smul.addr 2, 32
    %s480 = scalar_lea.vmem %s0, %s479
    %v481 = vld [vmem:[%s480] sm:%s3]
    %s482 = scalar_lea.vmem [#allocation0], 256
    %483 = vst [vmem:[%s482] sm:%s3] %v481
    %s484 = smul.addr 2, 31
    %s485 = scalar_lea.vmem %s0, %s484
    %v486 = vld [vmem:[%s485] sm:%s3]
    %s487 = scalar_lea.vmem [#allocation0], 248
    %488 = vst [vmem:[%s487] sm:%s3] %v486
    %s489 = smul.addr 2, 30
    %s490 = scalar_lea.vmem %s0, %s489
    %v491 = vld [vmem:[%s490] sm:%s3]
    %s492 = scalar_lea.vmem [#allocation0], 240
    %493 = vst [vmem:[%s492] sm:%s3] %v491
    %s494 = smul.addr 2, 29
    %s495 = scalar_lea.vmem %s0, %s494
    %v496 = vld [vmem:[%s495] sm:%s3]
    %s497 = scalar_lea.vmem [#allocation0], 232
    %498 = vst [vmem:[%s497] sm:%s3] %v496
    %s499 = smul.addr 2, 28
    %s500 = scalar_lea.vmem %s0, %s499
    %v501 = vld [vmem:[%s500] sm:%s3]
    %s502 = scalar_lea.vmem [#allocation0], 224
    %503 = vst [vmem:[%s502] sm:%s3] %v501
    %s504 = smul.addr 2, 27
    %s505 = scalar_lea.vmem %s0, %s504
    %v506 = vld [vmem:[%s505] sm:%s3]
    %s507 = scalar_lea.vmem [#allocation0], 216
    %508 = vst [vmem:[%s507] sm:%s3] %v506
    %s509 = smul.addr 2, 26
    %s510 = scalar_lea.vmem %s0, %s509
    %v511 = vld [vmem:[%s510] sm:%s3]
    %s512 = scalar_lea.vmem [#allocation0], 208
    %513 = vst [vmem:[%s512] sm:%s3] %v511
    %s514 = smul.addr 2, 25
    %s515 = scalar_lea.vmem %s0, %s514
    %v516 = vld [vmem:[%s515] sm:%s3]
    %s517 = scalar_lea.vmem [#allocation0], 200
    %518 = vst [vmem:[%s517] sm:%s3] %v516
    %s519 = smul.addr 2, 24
    %s520 = scalar_lea.vmem %s0, %s519
    %v521 = vld [vmem:[%s520] sm:%s3]
    %s522 = scalar_lea.vmem [#allocation0], 192
    %523 = vst [vmem:[%s522] sm:%s3] %v521
    %s524 = smul.addr 2, 23
    %s525 = scalar_lea.vmem %s0, %s524
    %v526 = vld [vmem:[%s525] sm:%s3]
    %s527 = scalar_lea.vmem [#allocation0], 184
    %528 = vst [vmem:[%s527] sm:%s3] %v526
    %s529 = smul.addr 2, 22
    %s530 = scalar_lea.vmem %s0, %s529
    %v531 = vld [vmem:[%s530] sm:%s3]
    %s532 = scalar_lea.vmem [#allocation0], 176
    %533 = vst [vmem:[%s532] sm:%s3] %v531
    %s534 = smul.addr 2, 21
    %s535 = scalar_lea.vmem %s0, %s534
    %v536 = vld [vmem:[%s535] sm:%s3]
    %s537 = scalar_lea.vmem [#allocation0], 168
    %538 = vst [vmem:[%s537] sm:%s3] %v536
    %s539 = smul.addr 2, 20
    %s540 = scalar_lea.vmem %s0, %s539
    %v541 = vld [vmem:[%s540] sm:%s3]
    %s542 = scalar_lea.vmem [#allocation0], 160
    %543 = vst [vmem:[%s542] sm:%s3] %v541
    %s544 = smul.addr 2, 19
    %s545 = scalar_lea.vmem %s0, %s544
    %v546 = vld [vmem:[%s545] sm:%s3]
    %s547 = scalar_lea.vmem [#allocation0], 152
    %548 = vst [vmem:[%s547] sm:%s3] %v546
    %s549 = smul.addr 2, 18
    %s550 = scalar_lea.vmem %s0, %s549
    %v551 = vld [vmem:[%s550] sm:%s3]
    %s552 = scalar_lea.vmem [#allocation0], 144
    %553 = vst [vmem:[%s552] sm:%s3] %v551
    %s554 = smul.addr 2, 17
    %s555 = scalar_lea.vmem %s0, %s554
    %v556 = vld [vmem:[%s555] sm:%s3]
    %s557 = scalar_lea.vmem [#allocation0], 136
    %558 = vst [vmem:[%s557] sm:%s3] %v556
    %s559 = smul.addr 2, 16
    %s560 = scalar_lea.vmem %s0, %s559
    %v561 = vld [vmem:[%s560] sm:%s3]
    %s562 = scalar_lea.vmem [#allocation0], 128
    %563 = vst [vmem:[%s562] sm:%s3] %v561
    %s564 = smul.addr 2, 15
    %s565 = scalar_lea.vmem %s0, %s564
    %v566 = vld [vmem:[%s565] sm:%s3]
    %s567 = scalar_lea.vmem [#allocation0], 120
    %568 = vst [vmem:[%s567] sm:%s3] %v566
    %s569 = smul.addr 2, 14
    %s570 = scalar_lea.vmem %s0, %s569
    %v571 = vld [vmem:[%s570] sm:%s3]
    %s572 = scalar_lea.vmem [#allocation0], 112
    %573 = vst [vmem:[%s572] sm:%s3] %v571
    %s574 = smul.addr 2, 13
    %s575 = scalar_lea.vmem %s0, %s574
    %v576 = vld [vmem:[%s575] sm:%s3]
    %s577 = scalar_lea.vmem [#allocation0], 104
    %578 = vst [vmem:[%s577] sm:%s3] %v576
    %s579 = smul.addr 2, 12
    %s580 = scalar_lea.vmem %s0, %s579
    %v581 = vld [vmem:[%s580] sm:%s3]
    %s582 = scalar_lea.vmem [#allocation0], 96
    %583 = vst [vmem:[%s582] sm:%s3] %v581
    %s584 = smul.addr 2, 11
    %s585 = scalar_lea.vmem %s0, %s584
    %v586 = vld [vmem:[%s585] sm:%s3]
    %s587 = scalar_lea.vmem [#allocation0], 88
    %588 = vst [vmem:[%s587] sm:%s3] %v586
    %s589 = smul.addr 2, 10
    %s590 = scalar_lea.vmem %s0, %s589
    %v591 = vld [vmem:[%s590] sm:%s3]
    %s592 = scalar_lea.vmem [#allocation0], 80
    %593 = vst [vmem:[%s592] sm:%s3] %v591
    %s594 = smul.addr 2, 9
    %s595 = scalar_lea.vmem %s0, %s594
    %v596 = vld [vmem:[%s595] sm:%s3]
    %s597 = scalar_lea.vmem [#allocation0], 72
    %598 = vst [vmem:[%s597] sm:%s3] %v596
    %s599 = smul.addr 2, 8
    %s600 = scalar_lea.vmem %s0, %s599
    %v601 = vld [vmem:[%s600] sm:%s3]
    %s602 = scalar_lea.vmem [#allocation0], 64
    %603 = vst [vmem:[%s602] sm:%s3] %v601
    %s604 = smul.addr 2, 7
    %s605 = scalar_lea.vmem %s0, %s604
    %v606 = vld [vmem:[%s605] sm:%s3]
    %s607 = scalar_lea.vmem [#allocation0], 56
    %608 = vst [vmem:[%s607] sm:%s3] %v606
    %s609 = smul.addr 2, 6
    %s610 = scalar_lea.vmem %s0, %s609
    %v611 = vld [vmem:[%s610] sm:%s3]
    %s612 = scalar_lea.vmem [#allocation0], 48
    %613 = vst [vmem:[%s612] sm:%s3] %v611
    %s614 = smul.addr 2, 5
    %s615 = scalar_lea.vmem %s0, %s614
    %v616 = vld [vmem:[%s615] sm:%s3]
    %s617 = scalar_lea.vmem [#allocation0], 40
    %618 = vst [vmem:[%s617] sm:%s3] %v616
    %s619 = smul.addr 2, 4
    %s620 = scalar_lea.vmem %s0, %s619
    %v621 = vld [vmem:[%s620] sm:%s3]
    %s622 = scalar_lea.vmem [#allocation0], 32
    %623 = vst [vmem:[%s622] sm:%s3] %v621
    %s624 = smul.addr 2, 3
    %s625 = scalar_lea.vmem %s0, %s624
    %v626 = vld [vmem:[%s625] sm:%s3]
    %s627 = scalar_lea.vmem [#allocation0], 24
    %628 = vst [vmem:[%s627] sm:%s3] %v626
    %s629 = smul.addr 2, 2
    %s630 = scalar_lea.vmem %s0, %s629
    %v631 = vld [vmem:[%s630] sm:%s3]
    %s632 = scalar_lea.vmem [#allocation0], 16
    %633 = vst [vmem:[%s632] sm:%s3] %v631
    %s634 = scalar_lea.vmem %s0, 2
    %v635 = vld [vmem:[%s634] sm:%s3]
    %s636 = scalar_lea.vmem [#allocation0], 8
    %637 = vst [vmem:[%s636] sm:%s3] %v635
    %v638 = vld [vmem:[%s0] sm:%s3]
    %639 = vst [vmem:[#allocation0] sm:%s3] %v638
    %s640 = smov 3
    %v641 = vld [vmem:[#allocation0] ss:$16 sm:%s640]
    %s642 = smov 12
    %v643 = vld [vmem:[#allocation0] ss:$16 sm:%s642]
    %vm644 = vcmask 1043458
    %v645 = vsel %vm644, %v643, %v641
    %s646 = smov 48
    %v647 = vld [vmem:[#allocation0] ss:$16 sm:%s646]
    %vm648 = vcmask 1045508
    %v649 = vsel %vm648, %v647, %v645
    %s650 = smov 192
    %v651 = vld [vmem:[#allocation0] ss:$16 sm:%s650]
    %vm652 = vcmask 1047558
    %v653 = vsel %vm652, %v651, %v649
    %vm654 = vcmask 64512
    %655 = vst.msk [vmem:[%s1] sm:$0xff] %vm654, %v653
    %s656 = scalar_lea.vmem [#allocation0], 128
    %s657 = smov 3
    %v658 = vld [vmem:[%s656] ss:$16 sm:%s657]
    %s659 = scalar_lea.vmem [#allocation0], 128
    %s660 = smov 12
    %v661 = vld [vmem:[%s659] ss:$16 sm:%s660]
    %vm662 = vcmask 1043458
    %v663 = vsel %vm662, %v661, %v658
    %s664 = scalar_lea.vmem [#allocation0], 128
    %s665 = smov 48
    %v666 = vld [vmem:[%s664] ss:$16 sm:%s665]
    %vm667 = vcmask 1045508
    %v668 = vsel %vm667, %v666, %v663
    %s669 = scalar_lea.vmem [#allocation0], 128
    %s670 = smov 192
    %v671 = vld [vmem:[%s669] ss:$16 sm:%s670]
    %vm672 = vcmask 1047558
    %v673 = vsel %vm672, %v671, %v668
    %vm674 = vcmask 64512
    %s675 = scalar_lea.vmem %s1, 8
    %676 = vst.msk [vmem:[%s675] sm:$0xff] %vm674, %v673
    %s677 = scalar_lea.vmem [#allocation0], 256
    %s678 = smov 3
    %v679 = vld [vmem:[%s677] ss:$16 sm:%s678]
    %s680 = scalar_lea.vmem [#allocation0], 256
    %s681 = smov 12
    %v682 = vld [vmem:[%s680] ss:$16 sm:%s681]
    %vm683 = vcmask 1043458
    %v684 = vsel %vm683, %v682, %v679
    %s685 = scalar_lea.vmem [#allocation0], 256
    %s686 = smov 48
    %v687 = vld [vmem:[%s685] ss:$16 sm:%s686]
    %vm688 = vcmask 1045508
    %v689 = vsel %vm688, %v687, %v684
    %s690 = scalar_lea.vmem [#allocation0], 256
    %s691 = smov 192
    %v692 = vld [vmem:[%s690] ss:$16 sm:%s691]
    %vm693 = vcmask 1047558
    %v694 = vsel %vm693, %v692, %v689
    %vm695 = vcmask 64512
    %s696 = scalar_lea.vmem %s1, 16
    %697 = vst.msk [vmem:[%s696] sm:$0xff] %vm695, %v694
    %s698 = scalar_lea.vmem [#allocation0], 384
    %s699 = smov 3
    %v700 = vld [vmem:[%s698] ss:$16 sm:%s699]
    %s701 = scalar_lea.vmem [#allocation0], 384
    %s702 = smov 12
    %v703 = vld [vmem:[%s701] ss:$16 sm:%s702]
    %vm704 = vcmask 1043458
    %v705 = vsel %vm704, %v703, %v700
    %s706 = scalar_lea.vmem [#allocation0], 384
    %s707 = smov 48
    %v708 = vld [vmem:[%s706] ss:$16 sm:%s707]
    %vm709 = vcmask 1045508
    %v710 = vsel %vm709, %v708, %v705
    %s711 = scalar_lea.vmem [#allocation0], 384
    %s712 = smov 192
    %v713 = vld [vmem:[%s711] ss:$16 sm:%s712]
    %vm714 = vcmask 1047558
    %v715 = vsel %vm714, %v713, %v710
    %vm716 = vcmask 64512
    %s717 = scalar_lea.vmem %s1, 24
    %718 = vst.msk [vmem:[%s717] sm:$0xff] %vm716, %v715
    %s719 = scalar_lea.vmem [#allocation0], 512
    %s720 = smov 3
    %v721 = vld [vmem:[%s719] ss:$16 sm:%s720]
    %s722 = scalar_lea.vmem [#allocation0], 512
    %s723 = smov 12
    %v724 = vld [vmem:[%s722] ss:$16 sm:%s723]
    %vm725 = vcmask 1043458
    %v726 = vsel %vm725, %v724, %v721
    %s727 = scalar_lea.vmem [#allocation0], 512
    %s728 = smov 48
    %v729 = vld [vmem:[%s727] ss:$16 sm:%s728]
    %vm730 = vcmask 1045508
    %v731 = vsel %vm730, %v729, %v726
    %s732 = scalar_lea.vmem [#allocation0], 512
    %s733 = smov 192
    %v734 = vld [vmem:[%s732] ss:$16 sm:%s733]
    %vm735 = vcmask 1047558
    %v736 = vsel %vm735, %v734, %v731
    %vm737 = vcmask 64512
    %s738 = scalar_lea.vmem %s1, 32
    %739 = vst.msk [vmem:[%s738] sm:$0xff] %vm737, %v736
    %s740 = scalar_lea.vmem [#allocation0], 640
    %s741 = smov 3
    %v742 = vld [vmem:[%s740] ss:$16 sm:%s741]
    %s743 = scalar_lea.vmem [#allocation0], 640
    %s744 = smov 12
    %v745 = vld [vmem:[%s743] ss:$16 sm:%s744]
    %vm746 = vcmask 1043458
    %v747 = vsel %vm746, %v745, %v742
    %s748 = scalar_lea.vmem [#allocation0], 640
    %s749 = smov 48
    %v750 = vld [vmem:[%s748] ss:$16 sm:%s749]
    %vm751 = vcmask 1045508
    %v752 = vsel %vm751, %v750, %v747
    %s753 = scalar_lea.vmem [#allocation0], 640
    %s754 = smov 192
    %v755 = vld [vmem:[%s753] ss:$16 sm:%s754]
    %vm756 = vcmask 1047558
    %v757 = vsel %vm756, %v755, %v752
    %vm758 = vcmask 64512
    %s759 = scalar_lea.vmem %s1, 40
    %760 = vst.msk [vmem:[%s759] sm:$0xff] %vm758, %v757
    %s761 = scalar_lea.vmem [#allocation0], 768
    %s762 = smov 3
    %v763 = vld [vmem:[%s761] ss:$16 sm:%s762]
    %s764 = scalar_lea.vmem [#allocation0], 768
    %s765 = smov 12
    %v766 = vld [vmem:[%s764] ss:$16 sm:%s765]
    %vm767 = vcmask 1043458
    %v768 = vsel %vm767, %v766, %v763
    %s769 = scalar_lea.vmem [#allocation0], 768
    %s770 = smov 48
    %v771 = vld [vmem:[%s769] ss:$16 sm:%s770]
    %vm772 = vcmask 1045508
    %v773 = vsel %vm772, %v771, %v768
    %s774 = scalar_lea.vmem [#allocation0], 768
    %s775 = smov 192
    %v776 = vld [vmem:[%s774] ss:$16 sm:%s775]
    %vm777 = vcmask 1047558
    %v778 = vsel %vm777, %v776, %v773
    %vm779 = vcmask 64512
    %s780 = scalar_lea.vmem %s1, 48
    %781 = vst.msk [vmem:[%s780] sm:$0xff] %vm779, %v778
    %s782 = scalar_lea.vmem [#allocation0], 896
    %s783 = smov 3
    %v784 = vld [vmem:[%s782] ss:$16 sm:%s783]
    %s785 = scalar_lea.vmem [#allocation0], 896
    %s786 = smov 12
    %v787 = vld [vmem:[%s785] ss:$16 sm:%s786]
    %vm788 = vcmask 1043458
    %v789 = vsel %vm788, %v787, %v784
    %s790 = scalar_lea.vmem [#allocation0], 896
    %s791 = smov 48
    %v792 = vld [vmem:[%s790] ss:$16 sm:%s791]
    %vm793 = vcmask 1045508
    %v794 = vsel %vm793, %v792, %v789
    %s795 = scalar_lea.vmem [#allocation0], 896
    %s796 = smov 192
    %v797 = vld [vmem:[%s795] ss:$16 sm:%s796]
    %vm798 = vcmask 1047558
    %v799 = vsel %vm798, %v797, %v794
    %vm800 = vcmask 64512
    %s801 = scalar_lea.vmem %s1, 56
    %802 = vst.msk [vmem:[%s801] sm:$0xff] %vm800, %v799
    %s803 = scalar_lea.vmem [#allocation0], 9
    %s804 = smov 3
    %v805 = vld [vmem:[%s803] ss:$16 sm:%s804]
    %s806 = scalar_lea.vmem [#allocation0], 9
    %s807 = smov 12
    %v808 = vld [vmem:[%s806] ss:$16 sm:%s807]
    %vm809 = vcmask 1043458
    %v810 = vsel %vm809, %v808, %v805
    %s811 = scalar_lea.vmem [#allocation0], 9
    %s812 = smov 48
    %v813 = vld [vmem:[%s811] ss:$16 sm:%s812]
    %vm814 = vcmask 1045508
    %v815 = vsel %vm814, %v813, %v810
    %s816 = scalar_lea.vmem [#allocation0], 9
    %s817 = smov 192
    %v818 = vld [vmem:[%s816] ss:$16 sm:%s817]
    %vm819 = vcmask 1047558
    %v820 = vsel %vm819, %v818, %v815
    %821 = vrot.lane.b32.xlu0 %v820, 24
    %v822 = vpop.permute.xlu0 %821
    %vm823 = vcmask 261312
    %824 = vst.msk [vmem:[%s1] sm:$0xff] %vm823, %v822
    %s825 = scalar_lea.vmem [#allocation0], 521
    %s826 = smov 3
    %v827 = vld [vmem:[%s825] ss:$16 sm:%s826]
    %s828 = scalar_lea.vmem [#allocation0], 521
    %s829 = smov 12
    %v830 = vld [vmem:[%s828] ss:$16 sm:%s829]
    %vm831 = vcmask 1043458
    %v832 = vsel %vm831, %v830, %v827
    %s833 = scalar_lea.vmem [#allocation0], 521
    %s834 = smov 48
    %v835 = vld [vmem:[%s833] ss:$16 sm:%s834]
    %vm836 = vcmask 1045508
    %v837 = vsel %vm836, %v835, %v832
    %s838 = scalar_lea.vmem [#allocation0], 521
    %s839 = smov 192
    %v840 = vld [vmem:[%s838] ss:$16 sm:%s839]
    %vm841 = vcmask 1047558
    %v842 = vsel %vm841, %v840, %v837
    %843 = vrot.lane.b32.xlu0 %v842, 24
    %v844 = vpop.permute.xlu0 %843
    %vm845 = vcmask 261312
    %s846 = scalar_lea.vmem %s1, 32
    %847 = vst.msk [vmem:[%s846] sm:$0xff] %vm845, %v844
    %s848 = scalar_lea.vmem [#allocation0], 137
    %s849 = smov 3
    %v850 = vld [vmem:[%s848] ss:$16 sm:%s849]
    %s851 = scalar_lea.vmem [#allocation0], 137
    %s852 = smov 12
    %v853 = vld [vmem:[%s851] ss:$16 sm:%s852]
    %vm854 = vcmask 1043458
    %v855 = vsel %vm854, %v853, %v850
    %s856 = scalar_lea.vmem [#allocation0], 137
    %s857 = smov 48
    %v858 = vld [vmem:[%s856] ss:$16 sm:%s857]
    %vm859 = vcmask 1045508
    %v860 = vsel %vm859, %v858, %v855
    %s861 = scalar_lea.vmem [#allocation0], 137
    %s862 = smov 192
    %v863 = vld [vmem:[%s861] ss:$16 sm:%s862]
    %vm864 = vcmask 1047558
    %v865 = vsel %vm864, %v863, %v860
    %866 = vrot.lane.b32.xlu0 %v865, 24
    %v867 = vpop.permute.xlu0 %866
    %vm868 = vcmask 261312
    %s869 = scalar_lea.vmem %s1, 8
    %870 = vst.msk [vmem:[%s869] sm:$0xff] %vm868, %v867
    %s871 = scalar_lea.vmem [#allocation0], 649
    %s872 = smov 3
    %v873 = vld [vmem:[%s871] ss:$16 sm:%s872]
    %s874 = scalar_lea.vmem [#allocation0], 649
    %s875 = smov 12
    %v876 = vld [vmem:[%s874] ss:$16 sm:%s875]
    %vm877 = vcmask 1043458
    %v878 = vsel %vm877, %v876, %v873
    %s879 = scalar_lea.vmem [#allocation0], 649
    %s880 = smov 48
    %v881 = vld [vmem:[%s879] ss:$16 sm:%s880]
    %vm882 = vcmask 1045508
    %v883 = vsel %vm882, %v881, %v878
    %s884 = scalar_lea.vmem [#allocation0], 649
    %s885 = smov 192
    %v886 = vld [vmem:[%s884] ss:$16 sm:%s885]
    %vm887 = vcmask 1047558
    %v888 = vsel %vm887, %v886, %v883
    %889 = vrot.lane.b32.xlu0 %v888, 24
    %v890 = vpop.permute.xlu0 %889
    %vm891 = vcmask 261312
    %s892 = scalar_lea.vmem %s1, 40
    %893 = vst.msk [vmem:[%s892] sm:$0xff] %vm891, %v890
    %s894 = scalar_lea.vmem [#allocation0], 265
    %s895 = smov 3
    %v896 = vld [vmem:[%s894] ss:$16 sm:%s895]
    %s897 = scalar_lea.vmem [#allocation0], 265
    %s898 = smov 12
    %v899 = vld [vmem:[%s897] ss:$16 sm:%s898]
    %vm900 = vcmask 1043458
    %v901 = vsel %vm900, %v899, %v896
    %s902 = scalar_lea.vmem [#allocation0], 265
    %s903 = smov 48
    %v904 = vld [vmem:[%s902] ss:$16 sm:%s903]
    %vm905 = vcmask 1045508
    %v906 = vsel %vm905, %v904, %v901
    %s907 = scalar_lea.vmem [#allocation0], 265
    %s908 = smov 192
    %v909 = vld [vmem:[%s907] ss:$16 sm:%s908]
    %vm910 = vcmask 1047558
    %v911 = vsel %vm910, %v909, %v906
    %912 = vrot.lane.b32.xlu0 %v911, 24
    %v913 = vpop.permute.xlu0 %912
    %vm914 = vcmask 261312
    %s915 = scalar_lea.vmem %s1, 16
    %916 = vst.msk [vmem:[%s915] sm:$0xff] %vm914, %v913
    %s917 = scalar_lea.vmem [#allocation0], 777
    %s918 = smov 3
    %v919 = vld [vmem:[%s917] ss:$16 sm:%s918]
    %s920 = scalar_lea.vmem [#allocation0], 777
    %s921 = smov 12
    %v922 = vld [vmem:[%s920] ss:$16 sm:%s921]
    %vm923 = vcmask 1043458
    %v924 = vsel %vm923, %v922, %v919
    %s925 = scalar_lea.vmem [#allocation0], 777
    %s926 = smov 48
    %v927 = vld [vmem:[%s925] ss:$16 sm:%s926]
    %vm928 = vcmask 1045508
    %v929 = vsel %vm928, %v927, %v924
    %s930 = scalar_lea.vmem [#allocation0], 777
    %s931 = smov 192
    %v932 = vld [vmem:[%s930] ss:$16 sm:%s931]
    %vm933 = vcmask 1047558
    %v934 = vsel %vm933, %v932, %v929
    %935 = vrot.lane.b32.xlu0 %v934, 24
    %v936 = vpop.permute.xlu0 %935
    %vm937 = vcmask 261312
    %s938 = scalar_lea.vmem %s1, 48
    %939 = vst.msk [vmem:[%s938] sm:$0xff] %vm937, %v936
    %s940 = scalar_lea.vmem [#allocation0], 393
    %s941 = smov 3
    %v942 = vld [vmem:[%s940] ss:$16 sm:%s941]
    %s943 = scalar_lea.vmem [#allocation0], 393
    %s944 = smov 12
    %v945 = vld [vmem:[%s943] ss:$16 sm:%s944]
    %vm946 = vcmask 1043458
    %v947 = vsel %vm946, %v945, %v942
    %s948 = scalar_lea.vmem [#allocation0], 393
    %s949 = smov 48
    %v950 = vld [vmem:[%s948] ss:$16 sm:%s949]
    %vm951 = vcmask 1045508
    %v952 = vsel %vm951, %v950, %v947
    %s953 = scalar_lea.vmem [#allocation0], 393
    %s954 = smov 192
    %v955 = vld [vmem:[%s953] ss:$16 sm:%s954]
    %vm956 = vcmask 1047558
    %v957 = vsel %vm956, %v955, %v952
    %958 = vrot.lane.b32.xlu0 %v957, 24
    %v959 = vpop.permute.xlu0 %958
    %vm960 = vcmask 261312
    %s961 = scalar_lea.vmem %s1, 24
    %962 = vst.msk [vmem:[%s961] sm:$0xff] %vm960, %v959
    %s963 = scalar_lea.vmem [#allocation0], 905
    %s964 = smov 3
    %v965 = vld [vmem:[%s963] ss:$16 sm:%s964]
    %s966 = scalar_lea.vmem [#allocation0], 905
    %s967 = smov 12
    %v968 = vld [vmem:[%s966] ss:$16 sm:%s967]
    %vm969 = vcmask 1043458
    %v970 = vsel %vm969, %v968, %v965
    %s971 = scalar_lea.vmem [#allocation0], 905
    %s972 = smov 48
    %v973 = vld [vmem:[%s971] ss:$16 sm:%s972]
    %vm974 = vcmask 1045508
    %v975 = vsel %vm974, %v973, %v970
    %s976 = scalar_lea.vmem [#allocation0], 905
    %s977 = smov 192
    %v978 = vld [vmem:[%s976] ss:$16 sm:%s977]
    %vm979 = vcmask 1047558
    %v980 = vsel %vm979, %v978, %v975
    %981 = vrot.lane.b32.xlu0 %v980, 24
    %v982 = vpop.permute.xlu0 %981
    %vm983 = vcmask 261312
    %s984 = scalar_lea.vmem %s1, 56
    %985 = vst.msk [vmem:[%s984] sm:$0xff] %vm983, %v982
    %s986 = scalar_lea.vmem [#allocation0], 8
    %s987 = smov 3
    %v988 = vld [vmem:[%s986] ss:$16 sm:%s987]
    %s989 = scalar_lea.vmem [#allocation0], 8
    %s990 = smov 12
    %v991 = vld [vmem:[%s989] ss:$16 sm:%s990]
    %vm992 = vcmask 1043458
    %v993 = vsel %vm992, %v991, %v988
    %s994 = scalar_lea.vmem [#allocation0], 8
    %s995 = smov 48
    %v996 = vld [vmem:[%s994] ss:$16 sm:%s995]
    %vm997 = vcmask 1045508
    %v998 = vsel %vm997, %v996, %v993
    %s999 = scalar_lea.vmem [#allocation0], 8
    %s1000 = smov 192
    %v1001 = vld [vmem:[%s999] ss:$16 sm:%s1000]
    %vm1002 = vcmask 1047558
    %v1003 = vsel %vm1002, %v1001, %v998
    %1004 = vrot.lane.b32.xlu0 %v1003, 16
    %v1005 = vpop.permute.xlu0 %1004
    %vm1006 = vcmask 195712
    %1007 = vst.msk [vmem:[%s1] sm:$0xff] %vm1006, %v1005
    %s1008 = scalar_lea.vmem [#allocation0], 520
    %s1009 = smov 3
    %v1010 = vld [vmem:[%s1008] ss:$16 sm:%s1009]
    %s1011 = scalar_lea.vmem [#allocation0], 520
    %s1012 = smov 12
    %v1013 = vld [vmem:[%s1011] ss:$16 sm:%s1012]
    %vm1014 = vcmask 1043458
    %v1015 = vsel %vm1014, %v1013, %v1010
    %s1016 = scalar_lea.vmem [#allocation0], 520
    %s1017 = smov 48
    %v1018 = vld [vmem:[%s1016] ss:$16 sm:%s1017]
    %vm1019 = vcmask 1045508
    %v1020 = vsel %vm1019, %v1018, %v1015
    %s1021 = scalar_lea.vmem [#allocation0], 520
    %s1022 = smov 192
    %v1023 = vld [vmem:[%s1021] ss:$16 sm:%s1022]
    %vm1024 = vcmask 1047558
    %v1025 = vsel %vm1024, %v1023, %v1020
    %1026 = vrot.lane.b32.xlu0 %v1025, 16
    %v1027 = vpop.permute.xlu0 %1026
    %vm1028 = vcmask 195712
    %s1029 = scalar_lea.vmem %s1, 32
    %1030 = vst.msk [vmem:[%s1029] sm:$0xff] %vm1028, %v1027
    %s1031 = scalar_lea.vmem [#allocation0], 136
    %s1032 = smov 3
    %v1033 = vld [vmem:[%s1031] ss:$16 sm:%s1032]
    %s1034 = scalar_lea.vmem [#allocation0], 136
    %s1035 = smov 12
    %v1036 = vld [vmem:[%s1034] ss:$16 sm:%s1035]
    %vm1037 = vcmask 1043458
    %v1038 = vsel %vm1037, %v1036, %v1033
    %s1039 = scalar_lea.vmem [#allocation0], 136
    %s1040 = smov 48
    %v1041 = vld [vmem:[%s1039] ss:$16 sm:%s1040]
    %vm1042 = vcmask 1045508
    %v1043 = vsel %vm1042, %v1041, %v1038
    %s1044 = scalar_lea.vmem [#allocation0], 136
    %s1045 = smov 192
    %v1046 = vld [vmem:[%s1044] ss:$16 sm:%s1045]
    %vm1047 = vcmask 1047558
    %v1048 = vsel %vm1047, %v1046, %v1043
    %1049 = vrot.lane.b32.xlu0 %v1048, 16
    %v1050 = vpop.permute.xlu0 %1049
    %vm1051 = vcmask 195712
    %s1052 = scalar_lea.vmem %s1, 8
    %1053 = vst.msk [vmem:[%s1052] sm:$0xff] %vm1051, %v1050
    %s1054 = scalar_lea.vmem [#allocation0], 648
    %s1055 = smov 3
    %v1056 = vld [vmem:[%s1054] ss:$16 sm:%s1055]
    %s1057 = scalar_lea.vmem [#allocation0], 648
    %s1058 = smov 12
    %v1059 = vld [vmem:[%s1057] ss:$16 sm:%s1058]
    %vm1060 = vcmask 1043458
    %v1061 = vsel %vm1060, %v1059, %v1056
    %s1062 = scalar_lea.vmem [#allocation0], 648
    %s1063 = smov 48
    %v1064 = vld [vmem:[%s1062] ss:$16 sm:%s1063]
    %vm1065 = vcmask 1045508
    %v1066 = vsel %vm1065, %v1064, %v1061
    %s1067 = scalar_lea.vmem [#allocation0], 648
    %s1068 = smov 192
    %v1069 = vld [vmem:[%s1067] ss:$16 sm:%s1068]
    %vm1070 = vcmask 1047558
    %v1071 = vsel %vm1070, %v1069, %v1066
    %1072 = vrot.lane.b32.xlu0 %v1071, 16
    %v1073 = vpop.permute.xlu0 %1072
    %vm1074 = vcmask 195712
    %s1075 = scalar_lea.vmem %s1, 40
    %1076 = vst.msk [vmem:[%s1075] sm:$0xff] %vm1074, %v1073
    %s1077 = scalar_lea.vmem [#allocation0], 264
    %s1078 = smov 3
    %v1079 = vld [vmem:[%s1077] ss:$16 sm:%s1078]
    %s1080 = scalar_lea.vmem [#allocation0], 264
    %s1081 = smov 12
    %v1082 = vld [vmem:[%s1080] ss:$16 sm:%s1081]
    %vm1083 = vcmask 1043458
    %v1084 = vsel %vm1083, %v1082, %v1079
    %s1085 = scalar_lea.vmem [#allocation0], 264
    %s1086 = smov 48
    %v1087 = vld [vmem:[%s1085] ss:$16 sm:%s1086]
    %vm1088 = vcmask 1045508
    %v1089 = vsel %vm1088, %v1087, %v1084
    %s1090 = scalar_lea.vmem [#allocation0], 264
    %s1091 = smov 192
    %v1092 = vld [vmem:[%s1090] ss:$16 sm:%s1091]
    %vm1093 = vcmask 1047558
    %v1094 = vsel %vm1093, %v1092, %v1089
    %1095 = vrot.lane.b32.xlu0 %v1094, 16
    %v1096 = vpop.permute.xlu0 %1095
    %vm1097 = vcmask 195712
    %s1098 = scalar_lea.vmem %s1, 16
    %1099 = vst.msk [vmem:[%s1098] sm:$0xff] %vm1097, %v1096
    %s1100 = scalar_lea.vmem [#allocation0], 776
    %s1101 = smov 3
    %v1102 = vld [vmem:[%s1100] ss:$16 sm:%s1101]
    %s1103 = scalar_lea.vmem [#allocation0], 776
    %s1104 = smov 12
    %v1105 = vld [vmem:[%s1103] ss:$16 sm:%s1104]
    %vm1106 = vcmask 1043458
    %v1107 = vsel %vm1106, %v1105, %v1102
    %s1108 = scalar_lea.vmem [#allocation0], 776
    %s1109 = smov 48
    %v1110 = vld [vmem:[%s1108] ss:$16 sm:%s1109]
    %vm1111 = vcmask 1045508
    %v1112 = vsel %vm1111, %v1110, %v1107
    %s1113 = scalar_lea.vmem [#allocation0], 776
    %s1114 = smov 192
    %v1115 = vld [vmem:[%s1113] ss:$16 sm:%s1114]
    %vm1116 = vcmask 1047558
    %v1117 = vsel %vm1116, %v1115, %v1112
    %1118 = vrot.lane.b32.xlu0 %v1117, 16
    %v1119 = vpop.permute.xlu0 %1118
    %vm1120 = vcmask 195712
    %s1121 = scalar_lea.vmem %s1, 48
    %1122 = vst.msk [vmem:[%s1121] sm:$0xff] %vm1120, %v1119
    %s1123 = scalar_lea.vmem [#allocation0], 392
    %s1124 = smov 3
    %v1125 = vld [vmem:[%s1123] ss:$16 sm:%s1124]
    %s1126 = scalar_lea.vmem [#allocation0], 392
    %s1127 = smov 12
    %v1128 = vld [vmem:[%s1126] ss:$16 sm:%s1127]
    %vm1129 = vcmask 1043458
    %v1130 = vsel %vm1129, %v1128, %v1125
    %s1131 = scalar_lea.vmem [#allocation0], 392
    %s1132 = smov 48
    %v1133 = vld [vmem:[%s1131] ss:$16 sm:%s1132]
    %vm1134 = vcmask 1045508
    %v1135 = vsel %vm1134, %v1133, %v1130
    %s1136 = scalar_lea.vmem [#allocation0], 392
    %s1137 = smov 192
    %v1138 = vld [vmem:[%s1136] ss:$16 sm:%s1137]
    %vm1139 = vcmask 1047558
    %v1140 = vsel %vm1139, %v1138, %v1135
    %1141 = vrot.lane.b32.xlu0 %v1140, 16
    %v1142 = vpop.permute.xlu0 %1141
    %vm1143 = vcmask 195712
    %s1144 = scalar_lea.vmem %s1, 24
    %1145 = vst.msk [vmem:[%s1144] sm:$0xff] %vm1143, %v1142
    %s1146 = scalar_lea.vmem [#allocation0], 904
    %s1147 = smov 3
    %v1148 = vld [vmem:[%s1146] ss:$16 sm:%s1147]
    %s1149 = scalar_lea.vmem [#allocation0], 904
    %s1150 = smov 12
    %v1151 = vld [vmem:[%s1149] ss:$16 sm:%s1150]
    %vm1152 = vcmask 1043458
    %v1153 = vsel %vm1152, %v1151, %v1148
    %s1154 = scalar_lea.vmem [#allocation0], 904
    %s1155 = smov 48
    %v1156 = vld [vmem:[%s1154] ss:$16 sm:%s1155]
    %vm1157 = vcmask 1045508
    %v1158 = vsel %vm1157, %v1156, %v1153
    %s1159 = scalar_lea.vmem [#allocation0], 904
    %s1160 = smov 192
    %v1161 = vld [vmem:[%s1159] ss:$16 sm:%s1160]
    %vm1162 = vcmask 1047558
    %v1163 = vsel %vm1162, %v1161, %v1158
    %1164 = vrot.lane.b32.xlu0 %v1163, 16
    %v1165 = vpop.permute.xlu0 %1164
    %vm1166 = vcmask 195712
    %s1167 = scalar_lea.vmem %s1, 56
    %1168 = vst.msk [vmem:[%s1167] sm:$0xff] %vm1166, %v1165
    %s1169 = scalar_lea.vmem [#allocation0], 1
    %s1170 = smov 3
    %v1171 = vld [vmem:[%s1169] ss:$16 sm:%s1170]
    %s1172 = scalar_lea.vmem [#allocation0], 1
    %s1173 = smov 12
    %v1174 = vld [vmem:[%s1172] ss:$16 sm:%s1173]
    %vm1175 = vcmask 1043458
    %v1176 = vsel %vm1175, %v1174, %v1171
    %s1177 = scalar_lea.vmem [#allocation0], 1
    %s1178 = smov 48
    %v1179 = vld [vmem:[%s1177] ss:$16 sm:%s1178]
    %vm1180 = vcmask 1045508
    %v1181 = vsel %vm1180, %v1179, %v1176
    %s1182 = scalar_lea.vmem [#allocation0], 1
    %s1183 = smov 192
    %v1184 = vld [vmem:[%s1182] ss:$16 sm:%s1183]
    %vm1185 = vcmask 1047558
    %v1186 = vsel %vm1185, %v1184, %v1181
    %1187 = vrot.lane.b32.xlu0 %v1186, 8
    %v1188 = vpop.permute.xlu0 %1187
    %vm1189 = vcmask 130112
    %1190 = vst.msk [vmem:[%s1] sm:$0xff] %vm1189, %v1188
    %s1191 = scalar_lea.vmem [#allocation0], 513
    %s1192 = smov 3
    %v1193 = vld [vmem:[%s1191] ss:$16 sm:%s1192]
    %s1194 = scalar_lea.vmem [#allocation0], 513
    %s1195 = smov 12
    %v1196 = vld [vmem:[%s1194] ss:$16 sm:%s1195]
    %vm1197 = vcmask 1043458
    %v1198 = vsel %vm1197, %v1196, %v1193
    %s1199 = scalar_lea.vmem [#allocation0], 513
    %s1200 = smov 48
    %v1201 = vld [vmem:[%s1199] ss:$16 sm:%s1200]
    %vm1202 = vcmask 1045508
    %v1203 = vsel %vm1202, %v1201, %v1198
    %s1204 = scalar_lea.vmem [#allocation0], 513
    %s1205 = smov 192
    %v1206 = vld [vmem:[%s1204] ss:$16 sm:%s1205]
    %vm1207 = vcmask 1047558
    %v1208 = vsel %vm1207, %v1206, %v1203
    %1209 = vrot.lane.b32.xlu0 %v1208, 8
    %v1210 = vpop.permute.xlu0 %1209
    %vm1211 = vcmask 130112
    %s1212 = scalar_lea.vmem %s1, 32
    %1213 = vst.msk [vmem:[%s1212] sm:$0xff] %vm1211, %v1210
    %s1214 = scalar_lea.vmem [#allocation0], 129
    %s1215 = smov 3
    %v1216 = vld [vmem:[%s1214] ss:$16 sm:%s1215]
    %s1217 = scalar_lea.vmem [#allocation0], 129
    %s1218 = smov 12
    %v1219 = vld [vmem:[%s1217] ss:$16 sm:%s1218]
    %vm1220 = vcmask 1043458
    %v1221 = vsel %vm1220, %v1219, %v1216
    %s1222 = scalar_lea.vmem [#allocation0], 129
    %s1223 = smov 48
    %v1224 = vld [vmem:[%s1222] ss:$16 sm:%s1223]
    %vm1225 = vcmask 1045508
    %v1226 = vsel %vm1225, %v1224, %v1221
    %s1227 = scalar_lea.vmem [#allocation0], 129
    %s1228 = smov 192
    %v1229 = vld [vmem:[%s1227] ss:$16 sm:%s1228]
    %vm1230 = vcmask 1047558
    %v1231 = vsel %vm1230, %v1229, %v1226
    %1232 = vrot.lane.b32.xlu0 %v1231, 8
    %v1233 = vpop.permute.xlu0 %1232
    %vm1234 = vcmask 130112
    %s1235 = scalar_lea.vmem %s1, 8
    %1236 = vst.msk [vmem:[%s1235] sm:$0xff] %vm1234, %v1233
    %s1237 = scalar_lea.vmem [#allocation0], 641
    %s1238 = smov 3
    %v1239 = vld [vmem:[%s1237] ss:$16 sm:%s1238]
    %s1240 = scalar_lea.vmem [#allocation0], 641
    %s1241 = smov 12
    %v1242 = vld [vmem:[%s1240] ss:$16 sm:%s1241]
    %vm1243 = vcmask 1043458
    %v1244 = vsel %vm1243, %v1242, %v1239
    %s1245 = scalar_lea.vmem [#allocation0], 641
    %s1246 = smov 48
    %v1247 = vld [vmem:[%s1245] ss:$16 sm:%s1246]
    %vm1248 = vcmask 1045508
    %v1249 = vsel %vm1248, %v1247, %v1244
    %s1250 = scalar_lea.vmem [#allocation0], 641
    %s1251 = smov 192
    %v1252 = vld [vmem:[%s1250] ss:$16 sm:%s1251]
    %vm1253 = vcmask 1047558
    %v1254 = vsel %vm1253, %v1252, %v1249
    %1255 = vrot.lane.b32.xlu0 %v1254, 8
    %v1256 = vpop.permute.xlu0 %1255
    %vm1257 = vcmask 130112
    %s1258 = scalar_lea.vmem %s1, 40
    %1259 = vst.msk [vmem:[%s1258] sm:$0xff] %vm1257, %v1256
    %s1260 = scalar_lea.vmem [#allocation0], 257
    %s1261 = smov 3
    %v1262 = vld [vmem:[%s1260] ss:$16 sm:%s1261]
    %s1263 = scalar_lea.vmem [#allocation0], 257
    %s1264 = smov 12
    %v1265 = vld [vmem:[%s1263] ss:$16 sm:%s1264]
    %vm1266 = vcmask 1043458
    %v1267 = vsel %vm1266, %v1265, %v1262
    %s1268 = scalar_lea.vmem [#allocation0], 257
    %s1269 = smov 48
    %v1270 = vld [vmem:[%s1268] ss:$16 sm:%s1269]
    %vm1271 = vcmask 1045508
    %v1272 = vsel %vm1271, %v1270, %v1267
    %s1273 = scalar_lea.vmem [#allocation0], 257
    %s1274 = smov 192
    %v1275 = vld [vmem:[%s1273] ss:$16 sm:%s1274]
    %vm1276 = vcmask 1047558
    %v1277 = vsel %vm1276, %v1275, %v1272
    %1278 = vrot.lane.b32.xlu0 %v1277, 8
    %v1279 = vpop.permute.xlu0 %1278
    %vm1280 = vcmask 130112
    %s1281 = scalar_lea.vmem %s1, 16
    %1282 = vst.msk [vmem:[%s1281] sm:$0xff] %vm1280, %v1279
    %s1283 = scalar_lea.vmem [#allocation0], 769
    %s1284 = smov 3
    %v1285 = vld [vmem:[%s1283] ss:$16 sm:%s1284]
    %s1286 = scalar_lea.vmem [#allocation0], 769
    %s1287 = smov 12
    %v1288 = vld [vmem:[%s1286] ss:$16 sm:%s1287]
    %vm1289 = vcmask 1043458
    %v1290 = vsel %vm1289, %v1288, %v1285
    %s1291 = scalar_lea.vmem [#allocation0], 769
    %s1292 = smov 48
    %v1293 = vld [vmem:[%s1291] ss:$16 sm:%s1292]
    %vm1294 = vcmask 1045508
    %v1295 = vsel %vm1294, %v1293, %v1290
    %s1296 = scalar_lea.vmem [#allocation0], 769
    %s1297 = smov 192
    %v1298 = vld [vmem:[%s1296] ss:$16 sm:%s1297]
    %vm1299 = vcmask 1047558
    %v1300 = vsel %vm1299, %v1298, %v1295
    %1301 = vrot.lane.b32.xlu0 %v1300, 8
    %v1302 = vpop.permute.xlu0 %1301
    %vm1303 = vcmask 130112
    %s1304 = scalar_lea.vmem %s1, 48
    %1305 = vst.msk [vmem:[%s1304] sm:$0xff] %vm1303, %v1302
    %s1306 = scalar_lea.vmem [#allocation0], 385
    %s1307 = smov 3
    %v1308 = vld [vmem:[%s1306] ss:$16 sm:%s1307]
    %s1309 = scalar_lea.vmem [#allocation0], 385
    %s1310 = smov 12
    %v1311 = vld [vmem:[%s1309] ss:$16 sm:%s1310]
    %vm1312 = vcmask 1043458
    %v1313 = vsel %vm1312, %v1311, %v1308
    %s1314 = scalar_lea.vmem [#allocation0], 385
    %s1315 = smov 48
    %v1316 = vld [vmem:[%s1314] ss:$16 sm:%s1315]
    %vm1317 = vcmask 1045508
    %v1318 = vsel %vm1317, %v1316, %v1313
    %s1319 = scalar_lea.vmem [#allocation0], 385
    %s1320 = smov 192
    %v1321 = vld [vmem:[%s1319] ss:$16 sm:%s1320]
    %vm1322 = vcmask 1047558
    %v1323 = vsel %vm1322, %v1321, %v1318
    %1324 = vrot.lane.b32.xlu0 %v1323, 8
    %v1325 = vpop.permute.xlu0 %1324
    %vm1326 = vcmask 130112
    %s1327 = scalar_lea.vmem %s1, 24
    %1328 = vst.msk [vmem:[%s1327] sm:$0xff] %vm1326, %v1325
    %s1329 = scalar_lea.vmem [#allocation0], 897
    %s1330 = smov 3
    %v1331 = vld [vmem:[%s1329] ss:$16 sm:%s1330]
    %s1332 = scalar_lea.vmem [#allocation0], 897
    %s1333 = smov 12
    %v1334 = vld [vmem:[%s1332] ss:$16 sm:%s1333]
    %vm1335 = vcmask 1043458
    %v1336 = vsel %vm1335, %v1334, %v1331
    %s1337 = scalar_lea.vmem [#allocation0], 897
    %s1338 = smov 48
    %v1339 = vld [vmem:[%s1337] ss:$16 sm:%s1338]
    %vm1340 = vcmask 1045508
    %v1341 = vsel %vm1340, %v1339, %v1336
    %s1342 = scalar_lea.vmem [#allocation0], 897
    %s1343 = smov 192
    %v1344 = vld [vmem:[%s1342] ss:$16 sm:%s1343]
    %vm1345 = vcmask 1047558
    %v1346 = vsel %vm1345, %v1344, %v1341
    %1347 = vrot.lane.b32.xlu0 %v1346, 8
    %v1348 = vpop.permute.xlu0 %1347
    %vm1349 = vcmask 130112
    %s1350 = scalar_lea.vmem %s1, 56
    %1351 = vst.msk [vmem:[%s1350] sm:$0xff] %vm1349, %v1348

// kernel: tile.13
$region0: #{tile.13}
  #allocation0 [shape = 's32[1]{0}', space=sflag, size = 0x4, scoped, tag = 'scoped memory for tile.13']
  %s0 = inlined_call_operand.vmem [shape: f32[8], index: 0, kind: input, shape index: {}]
  %s1 = inlined_call_operand.vmem [shape: f32[16,8], index: 1, kind: output, shape index: {}]
  // Predicated region
  $region2: #{tile.13} parent=0 // pred_check
    _
  $region3: #{tile.13} parent=0 // pred_check_branch
    %3 = sbr.rel (0) target = $region5
  $region4: #{tile.13} parent=0 // pred_region
    _
  $region5: #{tile.13} parent=0 // pred_fallthru
    _
  %v4 = vld [vmem:[%s0] ss:$0 sm:$0xff]
  %5 = vst [vmem:[%s1] sm:$0xff] %v4
  %s6 = scalar_lea.vmem %s1, 8
  %7 = vst [vmem:[%s6] sm:$0xff] %v4

// kernel: decoder_block_forward.2
$region0: #{decoder_block_forward.2}
  #allocation0 [shape = 'u32[]', space=smem, size = 0x4, offset = 0x4, fixed_abs, tag = 'smem constant byte address 0x4 - core index']
  #allocation1 [shape = 'u32[144,128]{1,0:T(1,128)}', space=vmem, size = 0x12000, scoped, tag = 'internal scratch']
  %s0 = inlined_call_operand.vmem [shape: bf16[32,256], index: 0, kind: input, shape index: {}]
  %s1 = inlined_call_operand.vmem [shape: bf16[256,128], index: 1, kind: input, shape index: {}]
  %s2 = inlined_call_operand.vmem [shape: bf16[32,128], index: 2, kind: output, shape index: {0}]
  %s3 = inlined_call_operand.vmem [shape: f32[16,128], index: 3, kind: output, shape index: {1}]
  %4 = xla_tuple %s2, %s3
  %s5 = sld [smem:[#allocation0]]
  $region49: #{decoder_block_forward.2} parent=0
    _
  %s7 = ssub.s32 1, %s5
  %s8 = scalar_select 0, %s7, %s5
  loop: start=0, step=1, limit=4
  $region2: #{decoder_block_forward.2} parent=0 // loop_pre_header
    _
  $region3: #{decoder_block_forward.2} parent=0 // loop_header
    %s10 = sphi 0, %s14
    %p11 = scmp.ge.s32.totalorder %s10, 4
    %s17 = sphi 0, %s29
    %s18 = sphi 0, %s25
    %s19 = sphi 0, %s17
    %s20 = sphi 0, %s18
    %s21 = sphi 0, %s19
    %s22 = sphi 0, %s20
    %s32 = sphi 0, %s34
    %s35 = sphi 0, %s32
    %s36 = sphi 0, %s35
    %s52 = sphi 0, %s36
    %s58 = sphi 0, %s60
    %s61 = sphi 0, %s58
    %s62 = sphi 0, %s61
    %s78 = sphi 0, %s62
    %s86 = sphi 0, %s88
    %s89 = sphi 0, %s86
    %s90 = sphi 0, %s89
    %s106 = sphi 0, %s90
    %s114 = sphi 0, %s116
    %s117 = sphi 0, %s114
    %s118 = sphi 0, %s117
    %s134 = sphi 0, %s118
  $region4: #{decoder_block_forward.2} parent=0 // loop_header_branch
    %13 = sbr.rel (%p11) target = $region8
  $region5: #{decoder_block_forward.2} parent=0 // loop_body
    %s15 = ssub.s32 %s10, 1
    %s16 = ssub.s32 %s10, 2
    %s23 = sadd.s32 1, %s18
    %p24 = scmp.ge.s32.totalorder %s23, 1
    %s25 = scalar_select %p24, 0, %s23
    %s26 = sadd.s32 1, %s17
    %s27 = scalar_select %p24, %s26, %s17
    %p28 = scmp.ge.s32.totalorder %s27, 2
    %s29 = scalar_select %p28, 0, %s27
    %s30 = ssub.s32 %s17, %s29
    %p31 = scmp.eq.s32.totalorder %s30, 0
    %s33 = sadd.s32 %s32, 1
    %s34 = scalar_select %p31, %s32, %s33
    %p37 = pneg %p31
    %p38 = scmp.eq.s32.totalorder %s10, 1
    %p39 = por %p37, %p38
    %p40 = scmp.ne.s32.totalorder %s32, %s35
    %p41 = scmp.eq.s32.totalorder %s10, 0
    %p42 = por %p40, %p41
    %p43 = scmp.ne.s32.totalorder %s32, %s35
    %p44 = scmp.eq.s32.totalorder %s15, 1
    %p45 = por %p43, %p44
    %p46 = scmp.ne.s32.totalorder %s35, %s36
    %p47 = scmp.eq.s32.totalorder %s15, 0
    %p48 = por %p46, %p47
    %p49 = scmp.ne.s32.totalorder %s35, %s36
    %p50 = scmp.eq.s32.totalorder %s16, 1
    %p51 = por %p49, %p50
    %p53 = scmp.ne.s32.totalorder %s36, %s52
    %p54 = scmp.eq.s32.totalorder %s16, 0
    %p55 = por %p53, %p54
    %s56 = ssub.s32 %s18, %s25
    %p57 = scmp.eq.s32.totalorder %s56, 0
    %s59 = sadd.s32 %s58, 1
    %s60 = scalar_select %p57, %s58, %s59
    %p63 = pneg %p57
    %p64 = scmp.eq.s32.totalorder %s10, 1
    %p65 = por %p63, %p64
    %p66 = scmp.ne.s32.totalorder %s58, %s61
    %p67 = scmp.eq.s32.totalorder %s10, 0
    %p68 = por %p66, %p67
    %p69 = scmp.ne.s32.totalorder %s58, %s61
    %p70 = scmp.eq.s32.totalorder %s15, 1
    %p71 = por %p69, %p70
    %p72 = scmp.ne.s32.totalorder %s61, %s62
    %p73 = scmp.eq.s32.totalorder %s15, 0
    %p74 = por %p72, %p73
    %p75 = scmp.ne.s32.totalorder %s61, %s62
    %p76 = scmp.eq.s32.totalorder %s16, 1
    %p77 = por %p75, %p76
    %p79 = scmp.ne.s32.totalorder %s62, %s78
    %p80 = scmp.eq.s32.totalorder %s16, 0
    %p81 = por %p79, %p80
    %s82 = ssub.s32 %s17, %s29
    %s83 = ssub.s32 %s18, %s25
    %s84 = sor.u32 %s82, %s83
    %p85 = scmp.eq.s32.totalorder %s84, 0
    %s87 = sadd.s32 %s86, 1
    %s88 = scalar_select %p85, %s86, %s87
    %p91 = pneg %p85
    %p92 = scmp.eq.s32.totalorder %s10, 1
    %p93 = por %p91, %p92
    %p94 = scmp.ne.s32.totalorder %s86, %s89
    %p95 = scmp.eq.s32.totalorder %s10, 0
    %p96 = por %p94, %p95
    %p97 = scmp.ne.s32.totalorder %s86, %s89
    %p98 = scmp.eq.s32.totalorder %s15, 1
    %p99 = por %p97, %p98
    %p100 = scmp.ne.s32.totalorder %s89, %s90
    %p101 = scmp.eq.s32.totalorder %s15, 0
    %p102 = por %p100, %p101
    %p103 = scmp.ne.s32.totalorder %s89, %s90
    %p104 = scmp.eq.s32.totalorder %s16, 1
    %p105 = por %p103, %p104
    %p107 = scmp.ne.s32.totalorder %s90, %s106
    %p108 = scmp.eq.s32.totalorder %s16, 0
    %p109 = por %p107, %p108
    %s110 = ssub.s32 %s17, %s29
    %s111 = ssub.s32 %s18, %s25
    %s112 = sor.u32 %s110, %s111
    %p113 = scmp.eq.s32.totalorder %s112, 0
    %s115 = sadd.s32 %s114, 1
    %s116 = scalar_select %p113, %s114, %s115
    %p119 = pneg %p113
    %p120 = scmp.eq.s32.totalorder %s10, 1
    %p121 = por %p119, %p120
    %p122 = scmp.ne.s32.totalorder %s114, %s117
    %p123 = scmp.eq.s32.totalorder %s10, 0
    %p124 = por %p122, %p123
    %p125 = scmp.ne.s32.totalorder %s114, %s117
    %p126 = scmp.eq.s32.totalorder %s15, 1
    %p127 = por %p125, %p126
    %p128 = scmp.ne.s32.totalorder %s117, %s118
    %p129 = scmp.eq.s32.totalorder %s15, 0
    %p130 = por %p128, %p129
    %p131 = scmp.ne.s32.totalorder %s117, %s118
    %p132 = scmp.eq.s32.totalorder %s16, 1
    %p133 = por %p131, %p132
    %p135 = scmp.ne.s32.totalorder %s118, %s134
    %p136 = scmp.eq.s32.totalorder %s16, 0
    %p137 = por %p135, %p136
    %p138 = scmp.le.s32.totalorder 1, %s10
    %p139 = scmp.lt.s32.totalorder %s10, 3
    %p140 = pnand %p138, %p139
    %p141 = pneg %p140
    // Predicated region
    $region9: #{decoder_block_forward.2} parent=5 // pred_check
      _
    $region10: #{decoder_block_forward.2} parent=5 // pred_check_branch
      %143 = sbr.rel (%p140) target = $region12
    $region11: #{decoder_block_forward.2} parent=5 // pred_region
      %s144 = ssub.s32 %s10, 1
      // Predicated region
      $region13: #{decoder_block_forward.2} parent=11 // pred_check
        %p145 = pneg %p74
      $region14: #{decoder_block_forward.2} parent=11 // pred_check_branch
        %147 = sbr.rel (%p145) target = $region16
      $region15: #{decoder_block_forward.2} parent=11 // pred_region
        %p148 = scmp.lt.s32.totalorder %s20, 0
        %s149 = scalar_select %p148, %s20, 0
        %s150 = smul.addr %s149, 4
        %s151 = scalar_lea.vmem %s1, %s150
      $region16: #{decoder_block_forward.2} parent=11 // pred_fallthru
        _
    $region12: #{decoder_block_forward.2} parent=5 // pred_fallthru
      _
    %p152 = scmp.lt.s32.totalorder %s10, 2
    // Predicated region
    $region17: #{decoder_block_forward.2} parent=5 // pred_check
      %p153 = pneg %p152
    $region18: #{decoder_block_forward.2} parent=5 // pred_check_branch
      %155 = sbr.rel (%p153) target = $region20
    $region19: #{decoder_block_forward.2} parent=5 // pred_region
      // Predicated region
      $region21: #{decoder_block_forward.2} parent=19 // pred_check
        %p156 = pneg %p42
      $region22: #{decoder_block_forward.2} parent=19 // pred_check_branch
        %158 = sbr.rel (%p156) target = $region24
      $region23: #{decoder_block_forward.2} parent=19 // pred_region
        %s159 = smul.u32 2, %s17
        %p160 = scmp.lt.s32.totalorder %s159, 3
        %s161 = scalar_select %p160, %s159, 3
        %s162 = smul.addr %s161, 2
        %s163 = smul.addr %s162, 4
        %s164 = scalar_lea.vmem %s0, %s163
        %s165 = smul.u32 2, %s17
      $region24: #{decoder_block_forward.2} parent=19 // pred_fallthru
        _
    $region20: #{decoder_block_forward.2} parent=5 // pred_fallthru
      _
    %p166 = scmp.le.s32.totalorder 1, %s10
    %p167 = scmp.lt.s32.totalorder %s10, 3
    %p168 = pnand %p166, %p167
    %p169 = pneg %p168
    // Predicated region
    $region25: #{decoder_block_forward.2} parent=5 // pred_check
      _
    $region26: #{decoder_block_forward.2} parent=5 // pred_check_branch
      %171 = sbr.rel (%p168) target = $region28
    $region27: #{decoder_block_forward.2} parent=5 // pred_region
      %s172 = ssub.s32 %s10, 1
      %s173 = smul.u32 2, %s19
      %p174 = scmp.lt.s32.totalorder %s173, 3
      %s175 = scalar_select %p174, %s173, 3
      %s176 = smul.addr %s175, 2
      %s177 = smul.addr %s176, 4
      %s178 = scalar_lea.vmem %s0, %s177
      %p179 = pneg %p48
      %p180 = pneg %p45
      %p181 = scmp.lt.s32.totalorder %s20, 0
      %s182 = scalar_select %p181, %s20, 0
      %s183 = smul.addr %s182, 4
      %s184 = scalar_lea.vmem %s1, %s183
      %p185 = pneg %p74
      %p186 = pneg %p71
      %p187 = pneg %p102
      %p188 = pneg %p99
      %s189 = smul.u32 2, %s19
      %p190 = scmp.lt.s32.totalorder %s189, 3
      %s191 = scalar_select %p190, %s189, 3
      %p192 = scmp.lt.s32.totalorder %s20, 0
      %s193 = scalar_select %p192, %s20, 0
      %s194 = sadd.s32 %s193, %s191
      %s195 = smul.addr %s194, 4
      %s196 = scalar_lea.vmem %s2, %s195
      %p197 = pneg %p130
      %p198 = pneg %p127
      %p199 = scmp.lt.s32.totalorder %s19, 1
      %s200 = scalar_select %p199, %s19, 1
      %p201 = scmp.lt.s32.totalorder %s20, 0
      %s202 = scalar_select %p201, %s20, 0
      %s203 = sadd.s32 %s202, %s200
      %s204 = smul.addr %s203, 8
      %s205 = scalar_lea.vmem %s3, %s204
      %s206 = smul.u32 2, %s19
      %p207 = scmp.lt.s32.totalorder %s206, 3
      %s208 = scalar_select %p207, %s206, 3
      %s209 = smul.addr %s208, 2
      %s210 = smul.addr %s209, 4
      %s211 = scalar_lea.vmem %s0, %s210
      %s212 = smul.u32 2, %s19
      %p213 = scmp.lt.s32.totalorder %s20, 0
      %s214 = scalar_select %p213, %s20, 0
      %s215 = smul.addr %s214, 4
      %s216 = scalar_lea.vmem %s1, %s215
      %s217 = smul.u32 2, %s19
      %p218 = scmp.lt.s32.totalorder %s217, 3
      %s219 = scalar_select %p218, %s217, 3
      %p220 = scmp.lt.s32.totalorder %s20, 0
      %s221 = scalar_select %p220, %s20, 0
      %s222 = sadd.s32 %s221, %s219
      %s223 = smul.addr %s222, 4
      %s224 = scalar_lea.vmem %s2, %s223
      %s225 = smul.u32 2, %s19
      %p226 = scmp.lt.s32.totalorder %s19, 1
      %s227 = scalar_select %p226, %s19, 1
      %p228 = scmp.lt.s32.totalorder %s20, 0
      %s229 = scalar_select %p228, %s20, 0
      %s230 = sadd.s32 %s229, %s227
      %s231 = smul.addr %s230, 8
      %s232 = scalar_lea.vmem %s3, %s231
      %v234 = vld [vmem:[%s211] sm:$0xff]
      %v235 = vld [vmem:[%s211 + $0x8] sm:$0xff]
      %v236 = vld [vmem:[%s216] sm:$0xf]
      %v237 = vld [vmem:[%s216 + $0x4] sm:$0xf]
      %v238 = vld [vmem:[%s216 + $0x8] sm:$0xf]
      %v239 = vld [vmem:[%s216 + $0xc] sm:$0xf]
      %v240 = vld [vmem:[%s216 + $0x10] sm:$0xf]
      %v241 = vld [vmem:[%s216 + $0x14] sm:$0xf]
      %v242 = vld [vmem:[%s216 + $0x18] sm:$0xf]
      %v243 = vld [vmem:[%s216 + $0x1c] sm:$0xf]
      %v244 = vld [vmem:[%s216 + $0x20] sm:$0xf]
      %v245 = vld [vmem:[%s216 + $0x24] sm:$0xf]
      %v246 = vld [vmem:[%s216 + $0x28] sm:$0xf]
      %v247 = vld [vmem:[%s216 + $0x2c] sm:$0xf]
      %v248 = vld [vmem:[%s216 + $0x30] sm:$0xf]
      %v249 = vld [vmem:[%s216 + $0x34] sm:$0xf]
      %v250 = vld [vmem:[%s216 + $0x38] sm:$0xf]
      %v251 = vld [vmem:[%s216 + $0x3c] sm:$0xf]
      %v252 = vld [vmem:[%s216 + $0x40] sm:$0xf]
      %v253 = vld [vmem:[%s216 + $0x44] sm:$0xf]
      %v254 = vld [vmem:[%s216 + $0x48] sm:$0xf]
      %v255 = vld [vmem:[%s216 + $0x4c] sm:$0xf]
      %v256 = vld [vmem:[%s216 + $0x50] sm:$0xf]
      %v257 = vld [vmem:[%s216 + $0x54] sm:$0xf]
      %v258 = vld [vmem:[%s216 + $0x58] sm:$0xf]
      %v259 = vld [vmem:[%s216 + $0x5c] sm:$0xf]
      %v260 = vld [vmem:[%s216 + $0x60] sm:$0xf]
      %v261 = vld [vmem:[%s216 + $0x64] sm:$0xf]
      %v262 = vld [vmem:[%s216 + $0x68] sm:$0xf]
      %v263 = vld [vmem:[%s216 + $0x6c] sm:$0xf]
      %v264 = vld [vmem:[%s216 + $0x70] sm:$0xf]
      %v265 = vld [vmem:[%s216 + $0x74] sm:$0xf]
      %v266 = vld [vmem:[%s216 + $0x78] sm:$0xf]
      %v267 = vld [vmem:[%s216 + $0x7c] sm:$0xf]
      %v270 = vunpack.c.l.b16 %v234
      %v271 = vunpack.c.h.b16 %v234
      %v272 = vunpack.c.l.b16 %v235
      %v273 = vunpack.c.h.b16 %v235
      %v274 = vpack.c.b16 %v272, %v270
      %v275 = vpack.c.b16 %v273, %v271
      %v310 = vunpack.c.l.b16 %v236
      %v311 = vunpack.c.l.b16 %v237
      %v312 = vunpack.c.l.b16 %v238
      %v313 = vunpack.c.l.b16 %v239
      %v314 = vunpack.c.l.b16 %v240
      %v315 = vunpack.c.l.b16 %v241
      %v316 = vunpack.c.l.b16 %v242
      %v317 = vunpack.c.l.b16 %v243
      %v318 = vunpack.c.l.b16 %v244
      %v319 = vunpack.c.l.b16 %v245
      %v320 = vunpack.c.l.b16 %v246
      %v321 = vunpack.c.l.b16 %v247
      %v322 = vunpack.c.l.b16 %v248
      %v323 = vunpack.c.l.b16 %v249
      %v324 = vunpack.c.l.b16 %v250
      %v325 = vunpack.c.l.b16 %v251
      %v326 = vunpack.c.l.b16 %v252
      %v327 = vunpack.c.l.b16 %v253
      %v328 = vunpack.c.l.b16 %v254
      %v329 = vunpack.c.l.b16 %v255
      %v330 = vunpack.c.l.b16 %v256
      %v331 = vunpack.c.l.b16 %v257
      %v332 = vunpack.c.l.b16 %v258
      %v333 = vunpack.c.l.b16 %v259
      %v334 = vunpack.c.l.b16 %v260
      %v335 = vunpack.c.l.b16 %v261
      %v336 = vunpack.c.l.b16 %v262
      %v337 = vunpack.c.l.b16 %v263
      %v338 = vunpack.c.l.b16 %v264
      %v339 = vunpack.c.l.b16 %v265
      %v340 = vunpack.c.l.b16 %v266
      %v341 = vunpack.c.l.b16 %v267
      %v342 = vpack.c.b16 %v311, %v310
      %v343 = vpack.c.b16 %v313, %v312
      %v344 = vpack.c.b16 %v315, %v314
      %v345 = vpack.c.b16 %v317, %v316
      %v346 = vpack.c.b16 %v319, %v318
      %v347 = vpack.c.b16 %v321, %v320
      %v348 = vpack.c.b16 %v323, %v322
      %v349 = vpack.c.b16 %v325, %v324
      %v350 = vpack.c.b16 %v327, %v326
      %v351 = vpack.c.b16 %v329, %v328
      %v352 = vpack.c.b16 %v331, %v330
      %v353 = vpack.c.b16 %v333, %v332
      %v354 = vpack.c.b16 %v335, %v334
      %v355 = vpack.c.b16 %v337, %v336
      %v356 = vpack.c.b16 %v339, %v338
      %v357 = vpack.c.b16 %v341, %v340
      %374 = vmatprep.subr.bf16.mxu0 0
      %375 = vmatpush1.bf16.msra.mxu0 %v342
      %376 = vmatprep.subr.bf16.mxu0 0
      %377 = vmatpush1.bf16.msra.mxu0 %v343
      %378 = vmatprep.subr.bf16.mxu0 0
      %379 = vmatpush1.bf16.msra.mxu0 %v344
      %380 = vmatprep.subr.bf16.mxu0 0
      %381 = vmatpush1.bf16.msra.mxu0 %v345
      %382 = vmatprep.subr.bf16.mxu0 0
      %383 = vmatpush1.bf16.msra.mxu0 %v346
      %384 = vmatprep.subr.bf16.mxu0 0
      %385 = vmatpush1.bf16.msra.mxu0 %v347
      %386 = vmatprep.subr.bf16.mxu0 0
      %387 = vmatpush1.bf16.msra.mxu0 %v348
      %388 = vmatprep.subr.bf16.mxu0 0
      %389 = vmatpush1.bf16.msra.mxu0 %v349
      %390 = vmatprep.subr.bf16.mxu0 0
      %391 = vmatpush1.bf16.msra.mxu0 %v350
      %392 = vmatprep.subr.bf16.mxu0 0
      %393 = vmatpush1.bf16.msra.mxu0 %v351
      %394 = vmatprep.subr.bf16.mxu0 0
      %395 = vmatpush1.bf16.msra.mxu0 %v352
      %396 = vmatprep.subr.bf16.mxu0 0
      %397 = vmatpush1.bf16.msra.mxu0 %v353
      %398 = vmatprep.subr.bf16.mxu0 0
      %399 = vmatpush1.bf16.msra.mxu0 %v354
      %400 = vmatprep.subr.bf16.mxu0 0
      %401 = vmatpush1.bf16.msra.mxu0 %v355
      %402 = vmatprep.subr.bf16.mxu0 0
      %403 = vmatpush1.bf16.msra.mxu0 %v356
      %404 = vmatprep.subr.bf16.mxu0 0
      %405 = vmatpush1.bf16.msra.mxu0 %v357
      %406 = vmatprep.mubr.bf16.mxu0 %v275
      %407 = vmatmul.mubr.bf16.gmra.mrb[0].mxu0 %v274
      %v408 = vpop.f32.mrb[0].mxu0
      %v409 = vadd.f32 0.0, %v408
      %v410 = vpop.f32.mrb[0].mxu0
      %v411 = vpop.f32.mrb[0].mxu0
      %v412 = vadd.f32 0.0, %v411
      %v413 = vpop.f32.mrb[0].mxu0
      %414 = vdwg.mxu0
      %v415 = vpack.c.bf16 %v412, %v409
      %v417 = vunpack.c.l.b16 %v415
      %v418 = vunpack.c.h.b16 %v415
      %v419 = vpack.c.b16 %v417, %v417
      %v420 = vpack.c.b16 %v418, %v418
      %423 = vst [vmem:[%s224] sm:$0xf] %v419
      %424 = vst [vmem:[%s224 + $0x4] sm:$0xf] %v420
      %v425 = vadd.f32 %v409, %v412
      %v426 = vrot.slane %v425, 4
      %v427 = vadd.f32 %v425, %v426
      %v428 = vrot.slane %v427, 2
      %v429 = vadd.f32 %v427, %v428
      %v430 = vrot.slane %v429, 1
      %v431 = vadd.f32 %v429, %v430
      %v432 = vmul.f32 %v409, %v409
      %v433 = vmul.f32 %v412, %v412
      %v434 = vadd.f32 %v432, %v433
      %v435 = vrot.slane %v434, 4
      %v436 = vadd.f32 %v434, %v435
      %v437 = vrot.slane %v436, 2
      %v438 = vadd.f32 %v436, %v437
      %v439 = vrot.slane %v438, 1
      %v440 = vadd.f32 %v438, %v439
      %v441 = vlaneseq
      %v442 = vshrl.u32 %v441, 7
      %vm443 = vcmp.eq.s32.totalorder %v442, 0
      %vm444 = vcmp.eq.s32.totalorder %v442, 1
      %v445 = vsel %vm444, %v440, 0.0
      %v446 = vsel %vm443, %v431, %v445
      %447 = vst [vmem:[%s232] sm:$0xff] %v446
      %s448 = smul.u32 2, %s19
      %p449 = scmp.lt.s32.totalorder %s448, 3
      %s450 = scalar_select %p449, %s448, 3
      %p451 = scmp.lt.s32.totalorder %s20, 0
      %s452 = scalar_select %p451, %s20, 0
      %s453 = sadd.s32 %s452, %s450
      %s454 = smul.addr %s453, 4
      %s455 = scalar_lea.vmem %s2, %s454
      %p456 = scmp.lt.s32.totalorder %s19, 1
      %s457 = scalar_select %p456, %s19, 1
      %p458 = scmp.lt.s32.totalorder %s20, 0
      %s459 = scalar_select %p458, %s20, 0
      %s460 = sadd.s32 %s459, %s457
      %s461 = smul.addr %s460, 8
      %s462 = scalar_lea.vmem %s3, %s461
      // Predicated region
      $region29: #{decoder_block_forward.2} parent=27 // pred_check
        %p463 = pneg %p99
      $region30: #{decoder_block_forward.2} parent=27 // pred_check_branch
        %465 = sbr.rel (%p463) target = $region32
      $region31: #{decoder_block_forward.2} parent=27 // pred_region
        %s466 = smul.u32 2, %s19
      $region32: #{decoder_block_forward.2} parent=27 // pred_fallthru
        _
      // Predicated region
      $region33: #{decoder_block_forward.2} parent=27 // pred_check
        %p467 = pneg %p127
      $region34: #{decoder_block_forward.2} parent=27 // pred_check_branch
        %469 = sbr.rel (%p467) target = $region36
      $region35: #{decoder_block_forward.2} parent=27 // pred_region
        _
      $region36: #{decoder_block_forward.2} parent=27 // pred_fallthru
        _
    $region28: #{decoder_block_forward.2} parent=5 // pred_fallthru
      _
    %p470 = scmp.le.s32.totalorder 2, %s10
    // Predicated region
    $region37: #{decoder_block_forward.2} parent=5 // pred_check
      %p471 = pneg %p470
    $region38: #{decoder_block_forward.2} parent=5 // pred_check_branch
      %473 = sbr.rel (%p471) target = $region40
    $region39: #{decoder_block_forward.2} parent=5 // pred_region
      %s474 = ssub.s32 %s10, 2
      // Predicated region
      $region41: #{decoder_block_forward.2} parent=39 // pred_check
        %p475 = pneg %p105
      $region42: #{decoder_block_forward.2} parent=39 // pred_check_branch
        %477 = sbr.rel (%p475) target = $region44
      $region43: #{decoder_block_forward.2} parent=39 // pred_region
        %s478 = smul.u32 2, %s21
        %p479 = scmp.lt.s32.totalorder %s478, 3
        %s480 = scalar_select %p479, %s478, 3
        %p481 = scmp.lt.s32.totalorder %s22, 0
        %s482 = scalar_select %p481, %s22, 0
        %s483 = sadd.s32 %s482, %s480
        %s484 = smul.addr %s483, 4
        %s485 = scalar_lea.vmem %s2, %s484
      $region44: #{decoder_block_forward.2} parent=39 // pred_fallthru
        _
      // Predicated region
      $region45: #{decoder_block_forward.2} parent=39 // pred_check
        %p486 = pneg %p133
      $region46: #{decoder_block_forward.2} parent=39 // pred_check_branch
        %488 = sbr.rel (%p486) target = $region48
      $region47: #{decoder_block_forward.2} parent=39 // pred_region
        %p489 = scmp.lt.s32.totalorder %s21, 1
        %s490 = scalar_select %p489, %s21, 1
        %p491 = scmp.lt.s32.totalorder %s22, 0
        %s492 = scalar_select %p491, %s22, 0
        %s493 = sadd.s32 %s492, %s490
        %s494 = smul.addr %s493, 8
        %s495 = scalar_lea.vmem %s3, %s494
      $region48: #{decoder_block_forward.2} parent=39 // pred_fallthru
        _
    $region40: #{decoder_block_forward.2} parent=5 // pred_fallthru
      _
  $region6: #{decoder_block_forward.2} parent=0 // loop_footer
    %s14 = sadd.s32 1, %s10
  $region7: #{decoder_block_forward.2} parent=0 // loop_footer_branch
    %9 = sbr.rel target = $region3
  $region8: #{decoder_block_forward.2} parent=0 // loop_exit
    _

// kernel: decoder_block_forward.3
$region0: #{decoder_block_forward.3}
  #allocation0 [shape = 'u32[]', space=smem, size = 0x4, offset = 0x4, fixed_abs, tag = 'smem constant byte address 0x4 - core index']
  #allocation1 [shape = 'u32[144,128]{1,0:T(1,128)}', space=vmem, size = 0x12000, scoped, tag = 'internal scratch']
  %s0 = inlined_call_operand.vmem [shape: bf16[32,128], index: 0, kind: input, shape index: {}]
  %s1 = inlined_call_operand.vmem [shape: f32[1,128], index: 1, kind: input, shape index: {}]
  %s2 = inlined_call_operand.vmem [shape: f32[1,128], index: 2, kind: input, shape index: {}]
  %s3 = inlined_call_operand.vmem [shape: f32[32,128], index: 3, kind: output, shape index: {}]
  %s4 = sld [smem:[#allocation0]]
  $region45: #{decoder_block_forward.3} parent=0
    _
  %s6 = ssub.s32 1, %s4
  %s7 = scalar_select 0, %s6, %s4
  loop: start=0, step=1, limit=4
  $region2: #{decoder_block_forward.3} parent=0 // loop_pre_header
    _
  $region3: #{decoder_block_forward.3} parent=0 // loop_header
    %s9 = sphi 0, %s13
    %p10 = scmp.ge.s32.totalorder %s9, 4
    %s16 = sphi 0, %s28
    %s17 = sphi 0, %s24
    %s18 = sphi 0, %s16
    %s19 = sphi 0, %s17
    %s20 = sphi 0, %s18
    %s21 = sphi 0, %s19
    %s33 = sphi 0, %s35
    %s36 = sphi 0, %s33
    %s37 = sphi 0, %s36
    %s53 = sphi 0, %s37
    %s59 = sphi 0, %s61
    %s62 = sphi 0, %s59
    %s63 = sphi 0, %s62
    %s79 = sphi 0, %s63
    %s85 = sphi 0, %s87
    %s88 = sphi 0, %s85
    %s89 = sphi 0, %s88
    %s105 = sphi 0, %s89
    %s113 = sphi 0, %s115
    %s116 = sphi 0, %s113
    %s117 = sphi 0, %s116
    %s133 = sphi 0, %s117
  $region4: #{decoder_block_forward.3} parent=0 // loop_header_branch
    %12 = sbr.rel (%p10) target = $region8
  $region5: #{decoder_block_forward.3} parent=0 // loop_body
    %s14 = ssub.s32 %s9, 1
    %s15 = ssub.s32 %s9, 2
    %s22 = sadd.s32 1, %s17
    %p23 = scmp.ge.s32.totalorder %s22, 1
    %s24 = scalar_select %p23, 0, %s22
    %s25 = sadd.s32 1, %s16
    %s26 = scalar_select %p23, %s25, %s16
    %p27 = scmp.ge.s32.totalorder %s26, 2
    %s28 = scalar_select %p27, 0, %s26
    %s29 = ssub.s32 %s16, %s28
    %s30 = ssub.s32 %s17, %s24
    %s31 = sor.u32 %s29, %s30
    %p32 = scmp.eq.s32.totalorder %s31, 0
    %s34 = sadd.s32 %s33, 1
    %s35 = scalar_select %p32, %s33, %s34
    %p38 = pneg %p32
    %p39 = scmp.eq.s32.totalorder %s9, 1
    %p40 = por %p38, %p39
    %p41 = scmp.ne.s32.totalorder %s33, %s36
    %p42 = scmp.eq.s32.totalorder %s9, 0
    %p43 = por %p41, %p42
    %p44 = scmp.ne.s32.totalorder %s33, %s36
    %p45 = scmp.eq.s32.totalorder %s14, 1
    %p46 = por %p44, %p45
    %p47 = scmp.ne.s32.totalorder %s36, %s37
    %p48 = scmp.eq.s32.totalorder %s14, 0
    %p49 = por %p47, %p48
    %p50 = scmp.ne.s32.totalorder %s36, %s37
    %p51 = scmp.eq.s32.totalorder %s15, 1
    %p52 = por %p50, %p51
    %p54 = scmp.ne.s32.totalorder %s37, %s53
    %p55 = scmp.eq.s32.totalorder %s15, 0
    %p56 = por %p54, %p55
    %s57 = ssub.s32 %s17, %s24
    %p58 = scmp.eq.s32.totalorder %s57, 0
    %s60 = sadd.s32 %s59, 1
    %s61 = scalar_select %p58, %s59, %s60
    %p64 = pneg %p58
    %p65 = scmp.eq.s32.totalorder %s9, 1
    %p66 = por %p64, %p65
    %p67 = scmp.ne.s32.totalorder %s59, %s62
    %p68 = scmp.eq.s32.totalorder %s9, 0
    %p69 = por %p67, %p68
    %p70 = scmp.ne.s32.totalorder %s59, %s62
    %p71 = scmp.eq.s32.totalorder %s14, 1
    %p72 = por %p70, %p71
    %p73 = scmp.ne.s32.totalorder %s62, %s63
    %p74 = scmp.eq.s32.totalorder %s14, 0
    %p75 = por %p73, %p74
    %p76 = scmp.ne.s32.totalorder %s62, %s63
    %p77 = scmp.eq.s32.totalorder %s15, 1
    %p78 = por %p76, %p77
    %p80 = scmp.ne.s32.totalorder %s63, %s79
    %p81 = scmp.eq.s32.totalorder %s15, 0
    %p82 = por %p80, %p81
    %s83 = ssub.s32 %s17, %s24
    %p84 = scmp.eq.s32.totalorder %s83, 0
    %s86 = sadd.s32 %s85, 1
    %s87 = scalar_select %p84, %s85, %s86
    %p90 = pneg %p84
    %p91 = scmp.eq.s32.totalorder %s9, 1
    %p92 = por %p90, %p91
    %p93 = scmp.ne.s32.totalorder %s85, %s88
    %p94 = scmp.eq.s32.totalorder %s9, 0
    %p95 = por %p93, %p94
    %p96 = scmp.ne.s32.totalorder %s85, %s88
    %p97 = scmp.eq.s32.totalorder %s14, 1
    %p98 = por %p96, %p97
    %p99 = scmp.ne.s32.totalorder %s88, %s89
    %p100 = scmp.eq.s32.totalorder %s14, 0
    %p101 = por %p99, %p100
    %p102 = scmp.ne.s32.totalorder %s88, %s89
    %p103 = scmp.eq.s32.totalorder %s15, 1
    %p104 = por %p102, %p103
    %p106 = scmp.ne.s32.totalorder %s89, %s105
    %p107 = scmp.eq.s32.totalorder %s15, 0
    %p108 = por %p106, %p107
    %s109 = ssub.s32 %s16, %s28
    %s110 = ssub.s32 %s17, %s24
    %s111 = sor.u32 %s109, %s110
    %p112 = scmp.eq.s32.totalorder %s111, 0
    %s114 = sadd.s32 %s113, 1
    %s115 = scalar_select %p112, %s113, %s114
    %p118 = pneg %p112
    %p119 = scmp.eq.s32.totalorder %s9, 1
    %p120 = por %p118, %p119
    %p121 = scmp.ne.s32.totalorder %s113, %s116
    %p122 = scmp.eq.s32.totalorder %s9, 0
    %p123 = por %p121, %p122
    %p124 = scmp.ne.s32.totalorder %s113, %s116
    %p125 = scmp.eq.s32.totalorder %s14, 1
    %p126 = por %p124, %p125
    %p127 = scmp.ne.s32.totalorder %s116, %s117
    %p128 = scmp.eq.s32.totalorder %s14, 0
    %p129 = por %p127, %p128
    %p130 = scmp.ne.s32.totalorder %s116, %s117
    %p131 = scmp.eq.s32.totalorder %s15, 1
    %p132 = por %p130, %p131
    %p134 = scmp.ne.s32.totalorder %s117, %s133
    %p135 = scmp.eq.s32.totalorder %s15, 0
    %p136 = por %p134, %p135
    %p137 = scmp.le.s32.totalorder 1, %s9
    %p138 = scmp.lt.s32.totalorder %s9, 3
    %p139 = pnand %p137, %p138
    %p140 = pneg %p139
    // Predicated region
    $region9: #{decoder_block_forward.3} parent=5 // pred_check
      _
    $region10: #{decoder_block_forward.3} parent=5 // pred_check_branch
      %142 = sbr.rel (%p139) target = $region12
    $region11: #{decoder_block_forward.3} parent=5 // pred_region
      %s143 = ssub.s32 %s9, 1
      // Predicated region
      $region13: #{decoder_block_forward.3} parent=11 // pred_check
        %p144 = pneg %p75
      $region14: #{decoder_block_forward.3} parent=11 // pred_check_branch
        %146 = sbr.rel (%p144) target = $region16
      $region15: #{decoder_block_forward.3} parent=11 // pred_region
        %p147 = scmp.lt.s32.totalorder %s19, 0
        %s148 = scalar_select %p147, %s19, 0
        %s149 = scalar_lea.vmem %s1, %s148
      $region16: #{decoder_block_forward.3} parent=11 // pred_fallthru
        _
      // Predicated region
      $region17: #{decoder_block_forward.3} parent=11 // pred_check
        %p150 = pneg %p101
      $region18: #{decoder_block_forward.3} parent=11 // pred_check_branch
        %152 = sbr.rel (%p150) target = $region20
      $region19: #{decoder_block_forward.3} parent=11 // pred_region
        %p153 = scmp.lt.s32.totalorder %s19, 0
        %s154 = scalar_select %p153, %s19, 0
        %s155 = scalar_lea.vmem %s2, %s154
      $region20: #{decoder_block_forward.3} parent=11 // pred_fallthru
        _
    $region12: #{decoder_block_forward.3} parent=5 // pred_fallthru
      _
    %p156 = scmp.lt.s32.totalorder %s9, 2
    // Predicated region
    $region21: #{decoder_block_forward.3} parent=5 // pred_check
      %p157 = pneg %p156
    $region22: #{decoder_block_forward.3} parent=5 // pred_check_branch
      %159 = sbr.rel (%p157) target = $region24
    $region23: #{decoder_block_forward.3} parent=5 // pred_region
      // Predicated region
      $region25: #{decoder_block_forward.3} parent=23 // pred_check
        %p160 = pneg %p43
      $region26: #{decoder_block_forward.3} parent=23 // pred_check_branch
        %162 = sbr.rel (%p160) target = $region28
      $region27: #{decoder_block_forward.3} parent=23 // pred_region
        %s163 = smul.u32 2, %s16
        %p164 = scmp.lt.s32.totalorder %s163, 3
        %s165 = scalar_select %p164, %s163, 3
        %p166 = scmp.lt.s32.totalorder %s17, 0
        %s167 = scalar_select %p166, %s17, 0
        %s168 = sadd.s32 %s167, %s165
        %s169 = smul.addr %s168, 4
        %s170 = scalar_lea.vmem %s0, %s169
        %s171 = smul.u32 2, %s16
      $region28: #{decoder_block_forward.3} parent=23 // pred_fallthru
        _
    $region24: #{decoder_block_forward.3} parent=5 // pred_fallthru
      _
    %p172 = scmp.le.s32.totalorder 1, %s9
    %p173 = scmp.lt.s32.totalorder %s9, 3
    %p174 = pnand %p172, %p173
    %p175 = pneg %p174
    // Predicated region
    $region29: #{decoder_block_forward.3} parent=5 // pred_check
      _
    $region30: #{decoder_block_forward.3} parent=5 // pred_check_branch
      %177 = sbr.rel (%p174) target = $region32
    $region31: #{decoder_block_forward.3} parent=5 // pred_region
      %s178 = ssub.s32 %s9, 1
      %s179 = smul.u32 2, %s18
      %p180 = scmp.lt.s32.totalorder %s179, 3
      %s181 = scalar_select %p180, %s179, 3
      %p182 = scmp.lt.s32.totalorder %s19, 0
      %s183 = scalar_select %p182, %s19, 0
      %s184 = sadd.s32 %s183, %s181
      %s185 = smul.addr %s184, 4
      %s186 = scalar_lea.vmem %s0, %s185
      %p187 = pneg %p49
      %p188 = pneg %p46
      %p189 = scmp.lt.s32.totalorder %s19, 0
      %s190 = scalar_select %p189, %s19, 0
      %s191 = scalar_lea.vmem %s1, %s190
      %p192 = pneg %p75
      %p193 = pneg %p72
      %p194 = scmp.lt.s32.totalorder %s19, 0
      %s195 = scalar_select %p194, %s19, 0
      %s196 = scalar_lea.vmem %s2, %s195
      %p197 = pneg %p101
      %p198 = pneg %p98
      %p199 = pneg %p129
      %p200 = pneg %p126
      %s201 = smul.u32 2, %s18
      %p202 = scmp.lt.s32.totalorder %s201, 3
      %s203 = scalar_select %p202, %s201, 3
      %p204 = scmp.lt.s32.totalorder %s19, 0
      %s205 = scalar_select %p204, %s19, 0
      %s206 = sadd.s32 %s205, %s203
      %s207 = smul.addr %s206, 8
      %s208 = scalar_lea.vmem %s3, %s207
      %s209 = smul.u32 2, %s18
      %p210 = scmp.lt.s32.totalorder %s209, 3
      %s211 = scalar_select %p210, %s209, 3
      %p212 = scmp.lt.s32.totalorder %s19, 0
      %s213 = scalar_select %p212, %s19, 0
      %s214 = sadd.s32 %s213, %s211
      %s215 = smul.addr %s214, 4
      %s216 = scalar_lea.vmem %s0, %s215
      %s217 = smul.u32 2, %s18
      %p218 = scmp.lt.s32.totalorder %s19, 0
      %s219 = scalar_select %p218, %s19, 0
      %s220 = scalar_lea.vmem %s1, %s219
      %p221 = scmp.lt.s32.totalorder %s19, 0
      %s222 = scalar_select %p221, %s19, 0
      %s223 = scalar_lea.vmem %s2, %s222
      %s224 = smul.u32 2, %s18
      %p225 = scmp.lt.s32.totalorder %s224, 3
      %s226 = scalar_select %p225, %s224, 3
      %p227 = scmp.lt.s32.totalorder %s19, 0
      %s228 = scalar_select %p227, %s19, 0
      %s229 = sadd.s32 %s228, %s226
      %s230 = smul.addr %s229, 8
      %s231 = scalar_lea.vmem %s3, %s230
      %s232 = smul.u32 2, %s18
      %v233 = vld [vmem:[%s216] sm:$0xf]
      %v234 = vld [vmem:[%s216 + $0x4] sm:$0xf]
      %v235 = vunpack.c.l.bf16 %v233
      %v236 = vunpack.c.l.bf16 %v234
      %v237 = vld [vmem:[%s220] sm:$0x1]
      %v239 = vlaneseq
      %v240 = vshrl.u32 %v239, 7
      %v241 = vsub.s32 0, %v240
      %v242 = vrot.slane %v237, %v241
      %v244 = vmul.f32 %v235, %v242
      %v245 = vmul.f32 %v236, %v242
      %v246 = vld [vmem:[%s223] sm:$0x1]
      %v248 = vlaneseq
      %v249 = vshrl.u32 %v248, 7
      %v250 = vsub.s32 0, %v249
      %v251 = vrot.slane %v246, %v250
      %v253 = vadd.f32 %v244, %v251
      %v254 = vadd.f32 %v245, %v251
      %vm255 = vcmp.ge.f32.partialorder %v253, 0.0
      %vm256 = vcmp.ge.f32.partialorder %v254, 0.0
      %v257 = vmul.f32 %v253, 0.1
      %v258 = vmul.f32 %v254, 0.1
      %v259 = vsel %vm255, %v253, %v257
      %v260 = vsel %vm256, %v254, %v258
      %261 = vst [vmem:[%s231] sm:$0xff] %v259
      %262 = vst [vmem:[%s231 + $0x8] sm:$0xff] %v260
      %s263 = smul.u32 2, %s18
      %p264 = scmp.lt.s32.totalorder %s263, 3
      %s265 = scalar_select %p264, %s263, 3
      %p266 = scmp.lt.s32.totalorder %s19, 0
      %s267 = scalar_select %p266, %s19, 0
      %s268 = sadd.s32 %s267, %s265
      %s269 = smul.addr %s268, 8
      %s270 = scalar_lea.vmem %s3, %s269
      // Predicated region
      $region33: #{decoder_block_forward.3} parent=31 // pred_check
        %p271 = pneg %p126
      $region34: #{decoder_block_forward.3} parent=31 // pred_check_branch
        %273 = sbr.rel (%p271) target = $region36
      $region35: #{decoder_block_forward.3} parent=31 // pred_region
        %s274 = smul.u32 2, %s18
      $region36: #{decoder_block_forward.3} parent=31 // pred_fallthru
        _
    $region32: #{decoder_block_forward.3} parent=5 // pred_fallthru
      _
    %p275 = scmp.le.s32.totalorder 2, %s9
    // Predicated region
    $region37: #{decoder_block_forward.3} parent=5 // pred_check
      %p276 = pneg %p275
    $region38: #{decoder_block_forward.3} parent=5 // pred_check_branch
      %278 = sbr.rel (%p276) target = $region40
    $region39: #{decoder_block_forward.3} parent=5 // pred_region
      %s279 = ssub.s32 %s9, 2
      // Predicated region
      $region41: #{decoder_block_forward.3} parent=39 // pred_check
        %p280 = pneg %p132
      $region42: #{decoder_block_forward.3} parent=39 // pred_check_branch
        %282 = sbr.rel (%p280) target = $region44
      $region43: #{decoder_block_forward.3} parent=39 // pred_region
        %s283 = smul.u32 2, %s20
        %p284 = scmp.lt.s32.totalorder %s283, 3
        %s285 = scalar_select %p284, %s283, 3
        %p286 = scmp.lt.s32.totalorder %s21, 0
        %s287 = scalar_select %p286, %s21, 0
        %s288 = sadd.s32 %s287, %s285
        %s289 = smul.addr %s288, 8
        %s290 = scalar_lea.vmem %s3, %s289
      $region44: #{decoder_block_forward.3} parent=39 // pred_fallthru
        _
    $region40: #{decoder_block_forward.3} parent=5 // pred_fallthru
      _
  $region6: #{decoder_block_forward.3} parent=0 // loop_footer
    %s13 = sadd.s32 1, %s9
  $region7: #{decoder_block_forward.3} parent=0 // loop_footer_branch
    %8 = sbr.rel target = $region3
  $region8: #{decoder_block_forward.3} parent=0 // loop_exit
    _

</llo_original>
